<compile_context>
chip_gen: v7x
topology: tpu7x:2x2x1
jax: 0.10.0
libtpu: 0.0.40
codegen_flags: <defaults>
</compile_context>

<pallas_src>
import functools
import math

import jax
import jax.numpy as jnp
from jax import lax
from jax.experimental import pallas as pl
from jax.experimental.pallas import tpu as pltpu


def _attend_and_project(q, k, v, wo_ref, bo_ref, o_ref,
                        q_scr, k_scr, v_scr, acc_ref, *,
                        num_heads, head_dim, seq_len, batch_per_block):
    """Per-(batch element, head) attention with the output projection folded in.

    q/k/v: (R, H) float32 values (bias added; q already carries 1/sqrt(hd)).
    wo_ref: (H, H) native-dtype output weight (in x out layout).
    bo_ref: (1, H) float32 output bias.
    q_scr/k_scr/v_scr: (R, H) native-dtype VMEM scratch.
    acc_ref: (R, H) float32 VMEM accumulator.
    """
    cdt = q_scr.dtype   # native/compute dtype -> full-rate MXU operands

    # Stage q/k/v in VMEM in the compute dtype; only per-head slices are pulled
    # back into vregs inside the loop (bounds live ranges, halves scratch BW
    # when cdt is bf16).
    q_scr[...] = q.astype(cdt)
    k_scr[...] = k.astype(cdt)
    v_scr[...] = v.astype(cdt)

    acc_ref[...] = jnp.zeros_like(acc_ref)

    def batch_body(b_i, carry):
        r0 = b_i * seq_len
        if seq_len % 8 == 0:
            r0 = pl.multiple_of(r0, 8)
        rows = pl.ds(r0, seq_len)
        # Heads stay a static loop: num_heads is small (4-16) and static lane
        # offsets avoid dynamic minor-dim slicing.
        for h in range(num_heads):
            c0 = h * head_dim
            q_h = q_scr[rows, c0:c0 + head_dim]          # (S, hd), native dtype
            k_h = k_scr[rows, c0:c0 + head_dim]
            v_h = v_scr[rows, c0:c0 + head_dim]

            # scores = q_h @ k_h^T (scale already folded into q), f32 acc.
            scores = lax.dot_general(
                q_h, k_h, (((1,), (1,)), ((), ())),
                preferred_element_type=jnp.float32)       # (S, S) f32

            # numerically-stable softmax; reciprocal goes to the EUP slot
            m = jnp.max(scores, axis=-1, keepdims=True)
            e = jnp.exp(scores - m)
            denom = jnp.sum(e, axis=-1, keepdims=True)
            probs = (e * pl.reciprocal(denom, approx=True)).astype(cdt)

            # attn_dropout: identity (eval mode)

            ctx_h = jnp.dot(probs, v_h,
                            preferred_element_type=jnp.float32).astype(cdt)

            # Fold the output projection: accumulate this head's contribution
            # (lane-dense (S, H) update -> no head_dim-wide masked stores, no
            # ctx round-trip before the output matmul).
            acc_ref[rows, :] += jnp.dot(
                ctx_h, wo_ref[c0:c0 + head_dim, :],
                preferred_element_type=jnp.float32)
        return carry

    lax.fori_loop(0, batch_per_block, batch_body, 0)

    # output bias + output_dropout (identity in eval mode)
    o_ref[...] = (acc_ref[...] + bo_ref[...]).astype(o_ref.dtype)


def _mha_kernel_split(x_ref, wq_ref, wk_ref, wv_ref, b_ref, wo_ref, bo_ref,
                      o_ref, q_scr, k_scr, v_scr, acc_ref, **attn_kw):
    """QKV as three column-blocked matmuls (used when H % 128 != 0)."""
    x = x_ref[...]                                           # (R, H) native dtype
    q = jnp.dot(x, wq_ref[...], preferred_element_type=jnp.float32) + b_ref[0:1, :]
    k = jnp.dot(x, wk_ref[...], preferred_element_type=jnp.float32) + b_ref[1:2, :]
    v = jnp.dot(x, wv_ref[...], preferred_element_type=jnp.float32) + b_ref[2:3, :]
    _attend_and_project(q, k, v, wo_ref, bo_ref, o_ref,
                        q_scr, k_scr, v_scr, acc_ref, **attn_kw)


def _mha_kernel_fused(x_ref, wqkv_ref, b_ref, wo_ref, bo_ref,
                      o_ref, q_scr, k_scr, v_scr, acc_ref, *, hidden, **attn_kw):
    """Single (R,H)@(H,3H) QKV matmul (H % 128 == 0: q/k/v slices are
    lane-tile aligned)."""
    x = x_ref[...]
    qkv = jnp.dot(x, wqkv_ref[...], preferred_element_type=jnp.float32) + b_ref[...]
    q = qkv[:, 0:hidden]
    k = qkv[:, hidden:2 * hidden]
    v = qkv[:, 2 * hidden:3 * hidden]
    _attend_and_project(q, k, v, wo_ref, bo_ref, o_ref,
                        q_scr, k_scr, v_scr, acc_ref, **attn_kw)


def _mxu_target_rows():
    """Rows per block: 256 for the 256x256-MXU generations (v6e/v7x), else 128."""
    try:
        kind = jax.devices()[0].device_kind.lower()
    except Exception:
        kind = ""
    return 256 if ("v6" in kind or "v7" in kind) else 128


def faster_mha_pallas(x, w_qkv, b_qkv, w_out, b_out, num_heads):
    """x: (B, S, H); w_qkv: (3H, H) PyTorch layout; b_qkv: (3H,);
       w_out: (H, H) PyTorch layout; b_out: (H,)."""
    B, S, H = x.shape
    assert H % num_heads == 0
    head_dim = H // num_heads
    dtype = x.dtype
    itemsize = jnp.dtype(dtype).itemsize

    # --- weight/bias plumbing (plain JAX glue, done once) ---
    # PyTorch (out, in) -> (in, out); fold 1/sqrt(head_dim) into the Q columns
    # (free: removes per-score VPU multiplies inside the kernel).
    scale = 1.0 / math.sqrt(head_dim)
    col_scale = jnp.concatenate(
        [jnp.full((H,), scale, jnp.float32), jnp.ones((2 * H,), jnp.float32)])
    wqkv_t = jnp.transpose(w_qkv).astype(jnp.float32) * col_scale[None, :]
    bqkv = b_qkv.astype(jnp.float32) * col_scale
    wqkv_t = wqkv_t.astype(dtype)                 # native-dtype MXU operand
    wo_t = jnp.transpose(w_out).astype(dtype)     # (H, H) in x out
    bo = b_out.astype(jnp.float32).reshape(1, H)

    fuse_qkv = (H % 128 == 0)

    # --- rows per grid step ---
    target_rows = _mxu_target_rows()
    bb = max(1, min(B, target_rows // max(1, S)))
    if B >= 2:
        # keep grid >= 2 so the "parallel" axis can shard across both v7x TCs
        bb = min(bb, max(1, B // 2))

    def _row_block_ok(cand):
        # block must divide B and satisfy the (8, 128) sublane rule (or cover
        # the whole row dimension)
        return B % cand == 0 and (((cand * S) % 8 == 0) or cand * S == B * S)

    def _vmem_estimate(cand):
        r = cand * S
        io = 2 * 2 * r * H * itemsize                       # x + out, double-buffered
        wts = 2 * (4 * H * H * itemsize + 4 * H * 4)        # weights + f32 biases
        scr = 3 * r * H * itemsize + r * H * 4              # q/k/v + f32 accumulator
        tmp = 4 * r * H * 4 + 2 * S * S * 4                 # f32 projection temps + scores
        return io + wts + scr + tmp

    VMEM_BUDGET = 48 * 1024 * 1024      # conservative: fits v7x's 64 MiB VMEM
    while bb > 1 and not (_row_block_ok(bb) and _vmem_estimate(bb) <= VMEM_BUDGET):
        bb -= 1
    if not _row_block_ok(bb):
        bb = B                           # full-array row block is always legal
    R = bb * S
    grid = (B // bb,)

    est = _vmem_estimate(bb)
    vmem_limit = None
    if est > 16 * 1024 * 1024:
        # raise the scoped-VMEM limit, staying under v7x's 64 MiB physical VMEM
        vmem_limit = int(min(56 * 1024 * 1024,
                             max(32 * 1024 * 1024, 1.5 * est)))

    x2d = x.reshape(B * S, H)

    attn_kw = dict(num_heads=num_heads, head_dim=head_dim,
                   seq_len=S, batch_per_block=bb)

    if fuse_qkv:
        kernel = functools.partial(_mha_kernel_fused, hidden=H, **attn_kw)
        qkv_args = (wqkv_t, bqkv.reshape(1, 3 * H))
        qkv_specs = [pl.BlockSpec((H, 3 * H), lambda i: (0, 0)),   # fused Wqkv
                     pl.BlockSpec((1, 3 * H), lambda i: (0, 0))]   # fused bias
    else:
        kernel = functools.partial(_mha_kernel_split, **attn_kw)
        qkv_args = (wqkv_t[:, 0:H], wqkv_t[:, H:2 * H], wqkv_t[:, 2 * H:3 * H],
                    bqkv.reshape(3, H))
        qkv_specs = [pl.BlockSpec((H, H), lambda i: (0, 0)),       # wq (scaled)
                     pl.BlockSpec((H, H), lambda i: (0, 0)),       # wk
                     pl.BlockSpec((H, H), lambda i: (0, 0)),       # wv
                     pl.BlockSpec((3, H), lambda i: (0, 0))]       # packed biases

    out2d = pl.pallas_call(
        kernel,
        out_shape=jax.ShapeDtypeStruct((B * S, H), dtype),
        grid=grid,
        in_specs=[pl.BlockSpec((R, H), lambda i: (i, 0))] + qkv_specs + [
            pl.BlockSpec((H, H), lambda i: (0, 0)),    # wo
            pl.BlockSpec((1, H), lambda i: (0, 0)),    # bo
        ],
        out_specs=pl.BlockSpec((R, H), lambda i: (i, 0)),
        scratch_shapes=[pltpu.VMEM((R, H), dtype),         # q (native dtype)
                        pltpu.VMEM((R, H), dtype),         # k
                        pltpu.VMEM((R, H), dtype),         # v
                        pltpu.VMEM((R, H), jnp.float32)],  # output accumulator
        compiler_params=pltpu.CompilerParams(
            dimension_semantics=("parallel",),
            vmem_limit_bytes=vmem_limit),
    )(x2d, *qkv_args, wo_t, bo)

    return out2d.reshape(B, S, H)


def _reference_mha(x, w_qkv, b_qkv, w_out, b_out, num_heads):
    """Pure-JAX reference mirroring the PyTorch forward (eval mode)."""
    B, S, H = x.shape
    hd = H // num_heads
    qkv = jnp.einsum('bsh,oh->bso', x, w_qkv) + b_qkv         # (B,S,3H)
    q, k, v = jnp.split(qkv, 3, axis=-1)

    def heads(t):
        return t.reshape(B, S, num_heads, hd).transpose(0, 2, 1, 3)

    q, k, v = heads(q), heads(k), heads(v)
    scores = jnp.einsum('bhsd,bhtd->bhst', q, k) / math.sqrt(hd)
    probs = jax.nn.softmax(scores, axis=-1)
    ctx = jnp.einsum('bhst,bhtd->bhsd', probs, v)
    ctx = ctx.transpose(0, 2, 1, 3).reshape(B, S, H)
    return jnp.einsum('bsh,oh->bso', ctx, w_out) + b_out


if __name__ == "__main__":
    # config: hidden_size=32, num_attention_heads=4, qkv_bias=True
    B, S, H, NH = 2, 8, 32, 4

    key = jax.random.PRNGKey(0)
    kx, kw1, kb1, kw2, kb2 = jax.random.split(key, 5)

    x = jax.random.normal(kx, (B, S, H), dtype=jnp.float32)
    # PyTorch nn.Linear layout: (out_features, in_features)
    w_qkv = jax.random.normal(kw1, (3 * H, H), dtype=jnp.float32) * 0.05
    b_qkv = jax.random.normal(kb1, (3 * H,), dtype=jnp.float32) * 0.05
    w_out = jax.random.normal(kw2, (H, H), dtype=jnp.float32) * 0.05
    b_out = jax.random.normal(kb2, (H,), dtype=jnp.float32) * 0.05

    out = faster_mha_pallas(x, w_qkv, b_qkv, w_out, b_out, NH)
    out = jax.block_until_ready(out)

    ref = _reference_mha(x, w_qkv, b_qkv, w_out, b_out, NH)
    assert out.shape == (B, S, H)
    # slightly loose tolerance: softmax denominator uses the EUP approximate
    # reciprocal (pl.reciprocal(..., approx=True))
    assert jnp.allclose(out, ref, atol=1e-2, rtol=1e-2), "mismatch vs reference"

    print("KERNEL_OK")
</pallas_src>

<mosaic_0001>
module attributes {stable_mosaic.version = 11 : i64} {
  func.func @_mha_kernel_split(%arg0: i32, %arg1: memref<8x32xf32, #tpu.memory_space<vmem>>, %arg2: memref<32x32xf32, #tpu.memory_space<vmem>>, %arg3: memref<32x32xf32, #tpu.memory_space<vmem>>, %arg4: memref<32x32xf32, #tpu.memory_space<vmem>>, %arg5: memref<3x32xf32, #tpu.memory_space<vmem>>, %arg6: memref<32x32xf32, #tpu.memory_space<vmem>>, %arg7: memref<1x32xf32, #tpu.memory_space<vmem>>, %arg8: memref<8x32xf32, #tpu.memory_space<vmem>>, %arg9: memref<8x32xf32, #tpu.memory_space<vmem>>, %arg10: memref<8x32xf32, #tpu.memory_space<vmem>>, %arg11: memref<8x32xf32, #tpu.memory_space<vmem>>, %arg12: memref<8x32xf32, #tpu.memory_space<vmem>>) attributes {dimension_semantics = [#tpu.dimension_semantics<parallel>], iteration_bounds = array<i64: 2>, scalar_prefetch = 0 : i64, scratch_operands = 4 : i64, tpu.core_type = #tpu.core_type<tc>, window_params = [{transform_indices = @transform_0, window_bounds = array<i64: 8, 32>}, {pipeline_mode = #tpu.pipeline_mode<synchronous>, transform_indices = @transform_1, window_bounds = array<i64: 32, 32>}, {pipeline_mode = #tpu.pipeline_mode<synchronous>, transform_indices = @transform_2, window_bounds = array<i64: 32, 32>}, {pipeline_mode = #tpu.pipeline_mode<synchronous>, transform_indices = @transform_3, window_bounds = array<i64: 32, 32>}, {pipeline_mode = #tpu.pipeline_mode<synchronous>, transform_indices = @transform_4, window_bounds = array<i64: 3, 32>}, {pipeline_mode = #tpu.pipeline_mode<synchronous>, transform_indices = @transform_5, window_bounds = array<i64: 32, 32>}, {pipeline_mode = #tpu.pipeline_mode<synchronous>, transform_indices = @transform_6, window_bounds = array<i64: 1, 32>}, {transform_indices = @transform_7, window_bounds = array<i64: 8, 32>}]} {
    %c0 = arith.constant 0 : index
    %c0_0 = arith.constant 0 : index
    %0 = vector.load %arg1[%c0, %c0_0] : memref<8x32xf32, #tpu.memory_space<vmem>>, vector<8x32xf32>
    %c0_1 = arith.constant 0 : index
    %c0_2 = arith.constant 0 : index
    %1 = vector.load %arg2[%c0_1, %c0_2] : memref<32x32xf32, #tpu.memory_space<vmem>>, vector<32x32xf32>
    %cst = arith.constant dense<0.000000e+00> : vector<8x32xf32>
    %2 = tpu.matmul %0, %1, %cst {dimension_numbers = #tpu.dot_dimension_numbers<[1], [0], [0], [1], [0, 0, 1, 1], [], []>} : vector<8x32xf32>, vector<32x32xf32>, vector<8x32xf32> -> vector<8x32xf32>
    %c0_3 = arith.constant 0 : index
    %c0_4 = arith.constant 0 : index
    %3 = vector.load %arg5[%c0_3, %c0_4] : memref<3x32xf32, #tpu.memory_space<vmem>>, vector<1x32xf32>
    %4 = vector.broadcast %3 : vector<1x32xf32> to vector<8x32xf32>
    %5 = arith.addf %2, %4 : vector<8x32xf32>
    %c0_5 = arith.constant 0 : index
    %c0_6 = arith.constant 0 : index
    %6 = vector.load %arg3[%c0_5, %c0_6] : memref<32x32xf32, #tpu.memory_space<vmem>>, vector<32x32xf32>
    %cst_7 = arith.constant dense<0.000000e+00> : vector<8x32xf32>
    %7 = tpu.matmul %0, %6, %cst_7 {dimension_numbers = #tpu.dot_dimension_numbers<[1], [0], [0], [1], [0, 0, 1, 1], [], []>} : vector<8x32xf32>, vector<32x32xf32>, vector<8x32xf32> -> vector<8x32xf32>
    %c1 = arith.constant 1 : index
    %c0_8 = arith.constant 0 : index
    %8 = vector.load %arg5[%c1, %c0_8] : memref<3x32xf32, #tpu.memory_space<vmem>>, vector<1x32xf32>
    %9 = vector.broadcast %8 : vector<1x32xf32> to vector<8x32xf32>
    %10 = arith.addf %7, %9 : vector<8x32xf32>
    %c0_9 = arith.constant 0 : index
    %c0_10 = arith.constant 0 : index
    %11 = vector.load %arg4[%c0_9, %c0_10] : memref<32x32xf32, #tpu.memory_space<vmem>>, vector<32x32xf32>
    %cst_11 = arith.constant dense<0.000000e+00> : vector<8x32xf32>
    %12 = tpu.matmul %0, %11, %cst_11 {dimension_numbers = #tpu.dot_dimension_numbers<[1], [0], [0], [1], [0, 0, 1, 1], [], []>} : vector<8x32xf32>, vector<32x32xf32>, vector<8x32xf32> -> vector<8x32xf32>
    %c2 = arith.constant 2 : index
    %c0_12 = arith.constant 0 : index
    %13 = vector.load %arg5[%c2, %c0_12] : memref<3x32xf32, #tpu.memory_space<vmem>>, vector<1x32xf32>
    %14 = vector.broadcast %13 : vector<1x32xf32> to vector<8x32xf32>
    %15 = arith.addf %12, %14 : vector<8x32xf32>
    %c0_13 = arith.constant 0 : index
    %c0_14 = arith.constant 0 : index
    %16 = vector.load %arg9[%c0_13, %c0_14] : memref<8x32xf32, #tpu.memory_space<vmem>>, vector<8x32xf32>
    tpu.vector_store %arg9[%c0_13, %c0_14], %5 {strides = array<i32>} : memref<8x32xf32, #tpu.memory_space<vmem>>, vector<8x32xf32>,
    %c0_15 = arith.constant 0 : index
    %c0_16 = arith.constant 0 : index
    %17 = vector.load %arg10[%c0_15, %c0_16] : memref<8x32xf32, #tpu.memory_space<vmem>>, vector<8x32xf32>
    tpu.vector_store %arg10[%c0_15, %c0_16], %10 {strides = array<i32>} : memref<8x32xf32, #tpu.memory_space<vmem>>, vector<8x32xf32>,
    %c0_17 = arith.constant 0 : index
    %c0_18 = arith.constant 0 : index
    %18 = vector.load %arg11[%c0_17, %c0_18] : memref<8x32xf32, #tpu.memory_space<vmem>>, vector<8x32xf32>
    tpu.vector_store %arg11[%c0_17, %c0_18], %15 {strides = array<i32>} : memref<8x32xf32, #tpu.memory_space<vmem>>, vector<8x32xf32>,
    %cst_19 = arith.constant 0.000000e+00 : f32
    %19 = vector.broadcast %cst_19 : f32 to vector<8x32xf32>
    %c0_20 = arith.constant 0 : index
    %c0_21 = arith.constant 0 : index
    %20 = vector.load %arg12[%c0_20, %c0_21] : memref<8x32xf32, #tpu.memory_space<vmem>>, vector<8x32xf32>
    tpu.vector_store %arg12[%c0_20, %c0_21], %19 {strides = array<i32>} : memref<8x32xf32, #tpu.memory_space<vmem>>, vector<8x32xf32>,
    %c0_i32 = arith.constant 0 : i32
    %c8_i32 = arith.constant 8 : i32
    %21 = arith.muli %c0_i32, %c8_i32 : i32
    %22 = tpu.assume_multiple %21, 8 : i32
    %23 = arith.index_cast %22 : i32 to index
    %c0_22 = arith.constant 0 : index
    %24 = vector.load %arg9[%23, %c0_22] : memref<8x32xf32, #tpu.memory_space<vmem>>, vector<8x8xf32>
    %25 = arith.index_cast %22 : i32 to index
    %c0_23 = arith.constant 0 : index
    %26 = vector.load %arg10[%25, %c0_23] : memref<8x32xf32, #tpu.memory_space<vmem>>, vector<8x8xf32>
    %27 = arith.index_cast %22 : i32 to index
    %c0_24 = arith.constant 0 : index
    %28 = vector.load %arg11[%27, %c0_24] : memref<8x32xf32, #tpu.memory_space<vmem>>, vector<8x8xf32>
    %cst_25 = arith.constant dense<0.000000e+00> : vector<8x8xf32>
    %29 = tpu.matmul %24, %26, %cst_25 {dimension_numbers = #tpu.dot_dimension_numbers<[1], [1], [0], [0], [0, 0, 1, 0], [], []>} : vector<8x8xf32>, vector<8x8xf32>, vector<8x8xf32> -> vector<8x8xf32>
    %cst_26 = arith.constant dense<0xFF800000> : vector<8xf32>
    %30 = vector.multi_reduction <maximumf>, %29, %cst_26 [1] : vector<8x8xf32> to vector<8xf32>
    %31 = vector.shape_cast %30 : vector<8xf32> to vector<8x1xf32>
    %32 = vector.broadcast %31 : vector<8x1xf32> to vector<8x8xf32>
    %33 = arith.subf %29, %32 : vector<8x8xf32>
    %34 = math.exp %33 : vector<8x8xf32>
    %cst_27 = arith.constant dense<0.000000e+00> : vector<8xf32>
    %35 = vector.multi_reduction <add>, %34, %cst_27 [1] : vector<8x8xf32> to vector<8xf32>
    %36 = vector.shape_cast %35 : vector<8xf32> to vector<8x1xf32>
    %37 = tpu.reciprocal %36 {approx = true} : vector<8x1xf32> -> vector<8x1xf32>
    %38 = vector.broadcast %37 : vector<8x1xf32> to vector<8x8xf32>
    %39 = arith.mulf %34, %38 : vector<8x8xf32>
    %cst_28 = arith.constant dense<0.000000e+00> : vector<8x8xf32>
    %40 = tpu.matmul %39, %28, %cst_28 {dimension_numbers = #tpu.dot_dimension_numbers<[1], [0], [0], [1], [0, 0, 1, 1], [], []>} : vector<8x8xf32>, vector<8x8xf32>, vector<8x8xf32> -> vector<8x8xf32>
    %41 = arith.index_cast %22 : i32 to index
    %c0_29 = arith.constant 0 : index
    %42 = vector.load %arg12[%41, %c0_29] : memref<8x32xf32, #tpu.memory_space<vmem>>, vector<8x32xf32>
    %c0_30 = arith.constant 0 : index
    %c0_31 = arith.constant 0 : index
    %43 = vector.load %arg6[%c0_30, %c0_31] : memref<32x32xf32, #tpu.memory_space<vmem>>, vector<8x32xf32>
    %cst_32 = arith.constant dense<0.000000e+00> : vector<8x32xf32>
    %44 = tpu.matmul %40, %43, %cst_32 {dimension_numbers = #tpu.dot_dimension_numbers<[1], [0], [0], [1], [0, 0, 1, 1], [], []>} : vector<8x8xf32>, vector<8x32xf32>, vector<8x32xf32> -> vector<8x32xf32>
    %45 = arith.addf %42, %44 : vector<8x32xf32>
    %46 = arith.index_cast %22 : i32 to index
    %c0_33 = arith.constant 0 : index
    %47 = vector.load %arg12[%46, %c0_33] : memref<8x32xf32, #tpu.memory_space<vmem>>, vector<8x32xf32>
    tpu.vector_store %arg12[%46, %c0_33], %45 {strides = array<i32>} : memref<8x32xf32, #tpu.memory_space<vmem>>, vector<8x32xf32>,
    %48 = arith.index_cast %22 : i32 to index
    %c8 = arith.constant 8 : index
    %49 = vector.load %arg9[%48, %c8] : memref<8x32xf32, #tpu.memory_space<vmem>>, vector<8x8xf32>
    %50 = arith.index_cast %22 : i32 to index
    %c8_34 = arith.constant 8 : index
    %51 = vector.load %arg10[%50, %c8_34] : memref<8x32xf32, #tpu.memory_space<vmem>>, vector<8x8xf32>
    %52 = arith.index_cast %22 : i32 to index
    %c8_35 = arith.constant 8 : index
    %53 = vector.load %arg11[%52, %c8_35] : memref<8x32xf32, #tpu.memory_space<vmem>>, vector<8x8xf32>
    %cst_36 = arith.constant dense<0.000000e+00> : vector<8x8xf32>
    %54 = tpu.matmul %49, %51, %cst_36 {dimension_numbers = #tpu.dot_dimension_numbers<[1], [1], [0], [0], [0, 0, 1, 0], [], []>} : vector<8x8xf32>, vector<8x8xf32>, vector<8x8xf32> -> vector<8x8xf32>
    %cst_37 = arith.constant dense<0xFF800000> : vector<8xf32>
    %55 = vector.multi_reduction <maximumf>, %54, %cst_37 [1] : vector<8x8xf32> to vector<8xf32>
    %56 = vector.shape_cast %55 : vector<8xf32> to vector<8x1xf32>
    %57 = vector.broadcast %56 : vector<8x1xf32> to vector<8x8xf32>
    %58 = arith.subf %54, %57 : vector<8x8xf32>
    %59 = math.exp %58 : vector<8x8xf32>
    %cst_38 = arith.constant dense<0.000000e+00> : vector<8xf32>
    %60 = vector.multi_reduction <add>, %59, %cst_38 [1] : vector<8x8xf32> to vector<8xf32>
    %61 = vector.shape_cast %60 : vector<8xf32> to vector<8x1xf32>
    %62 = tpu.reciprocal %61 {approx = true} : vector<8x1xf32> -> vector<8x1xf32>
    %63 = vector.broadcast %62 : vector<8x1xf32> to vector<8x8xf32>
    %64 = arith.mulf %59, %63 : vector<8x8xf32>
    %cst_39 = arith.constant dense<0.000000e+00> : vector<8x8xf32>
    %65 = tpu.matmul %64, %53, %cst_39 {dimension_numbers = #tpu.dot_dimension_numbers<[1], [0], [0], [1], [0, 0, 1, 1], [], []>} : vector<8x8xf32>, vector<8x8xf32>, vector<8x8xf32> -> vector<8x8xf32>
    %66 = arith.index_cast %22 : i32 to index
    %c0_40 = arith.constant 0 : index
    %67 = vector.load %arg12[%66, %c0_40] : memref<8x32xf32, #tpu.memory_space<vmem>>, vector<8x32xf32>
    %c8_41 = arith.constant 8 : index
    %c0_42 = arith.constant 0 : index
    %68 = vector.load %arg6[%c8_41, %c0_42] : memref<32x32xf32, #tpu.memory_space<vmem>>, vector<8x32xf32>
    %cst_43 = arith.constant dense<0.000000e+00> : vector<8x32xf32>
    %69 = tpu.matmul %65, %68, %cst_43 {dimension_numbers = #tpu.dot_dimension_numbers<[1], [0], [0], [1], [0, 0, 1, 1], [], []>} : vector<8x8xf32>, vector<8x32xf32>, vector<8x32xf32> -> vector<8x32xf32>
    %70 = arith.addf %67, %69 : vector<8x32xf32>
    %71 = arith.index_cast %22 : i32 to index
    %c0_44 = arith.constant 0 : index
    %72 = vector.load %arg12[%71, %c0_44] : memref<8x32xf32, #tpu.memory_space<vmem>>, vector<8x32xf32>
    tpu.vector_store %arg12[%71, %c0_44], %70 {strides = array<i32>} : memref<8x32xf32, #tpu.memory_space<vmem>>, vector<8x32xf32>,
    %73 = arith.index_cast %22 : i32 to index
    %c16 = arith.constant 16 : index
    %74 = vector.load %arg9[%73, %c16] : memref<8x32xf32, #tpu.memory_space<vmem>>, vector<8x8xf32>
    %75 = arith.index_cast %22 : i32 to index
    %c16_45 = arith.constant 16 : index
    %76 = vector.load %arg10[%75, %c16_45] : memref<8x32xf32, #tpu.memory_space<vmem>>, vector<8x8xf32>
    %77 = arith.index_cast %22 : i32 to index
    %c16_46 = arith.constant 16 : index
    %78 = vector.load %arg11[%77, %c16_46] : memref<8x32xf32, #tpu.memory_space<vmem>>, vector<8x8xf32>
    %cst_47 = arith.constant dense<0.000000e+00> : vector<8x8xf32>
    %79 = tpu.matmul %74, %76, %cst_47 {dimension_numbers = #tpu.dot_dimension_numbers<[1], [1], [0], [0], [0, 0, 1, 0], [], []>} : vector<8x8xf32>, vector<8x8xf32>, vector<8x8xf32> -> vector<8x8xf32>
    %cst_48 = arith.constant dense<0xFF800000> : vector<8xf32>
    %80 = vector.multi_reduction <maximumf>, %79, %cst_48 [1] : vector<8x8xf32> to vector<8xf32>
    %81 = vector.shape_cast %80 : vector<8xf32> to vector<8x1xf32>
    %82 = vector.broadcast %81 : vector<8x1xf32> to vector<8x8xf32>
    %83 = arith.subf %79, %82 : vector<8x8xf32>
    %84 = math.exp %83 : vector<8x8xf32>
    %cst_49 = arith.constant dense<0.000000e+00> : vector<8xf32>
    %85 = vector.multi_reduction <add>, %84, %cst_49 [1] : vector<8x8xf32> to vector<8xf32>
    %86 = vector.shape_cast %85 : vector<8xf32> to vector<8x1xf32>
    %87 = tpu.reciprocal %86 {approx = true} : vector<8x1xf32> -> vector<8x1xf32>
    %88 = vector.broadcast %87 : vector<8x1xf32> to vector<8x8xf32>
    %89 = arith.mulf %84, %88 : vector<8x8xf32>
    %cst_50 = arith.constant dense<0.000000e+00> : vector<8x8xf32>
    %90 = tpu.matmul %89, %78, %cst_50 {dimension_numbers = #tpu.dot_dimension_numbers<[1], [0], [0], [1], [0, 0, 1, 1], [], []>} : vector<8x8xf32>, vector<8x8xf32>, vector<8x8xf32> -> vector<8x8xf32>
    %91 = arith.index_cast %22 : i32 to index
    %c0_51 = arith.constant 0 : index
    %92 = vector.load %arg12[%91, %c0_51] : memref<8x32xf32, #tpu.memory_space<vmem>>, vector<8x32xf32>
    %c16_52 = arith.constant 16 : index
    %c0_53 = arith.constant 0 : index
    %93 = vector.load %arg6[%c16_52, %c0_53] : memref<32x32xf32, #tpu.memory_space<vmem>>, vector<8x32xf32>
    %cst_54 = arith.constant dense<0.000000e+00> : vector<8x32xf32>
    %94 = tpu.matmul %90, %93, %cst_54 {dimension_numbers = #tpu.dot_dimension_numbers<[1], [0], [0], [1], [0, 0, 1, 1], [], []>} : vector<8x8xf32>, vector<8x32xf32>, vector<8x32xf32> -> vector<8x32xf32>
    %95 = arith.addf %92, %94 : vector<8x32xf32>
    %96 = arith.index_cast %22 : i32 to index
    %c0_55 = arith.constant 0 : index
    %97 = vector.load %arg12[%96, %c0_55] : memref<8x32xf32, #tpu.memory_space<vmem>>, vector<8x32xf32>
    tpu.vector_store %arg12[%96, %c0_55], %95 {strides = array<i32>} : memref<8x32xf32, #tpu.memory_space<vmem>>, vector<8x32xf32>,
    %98 = arith.index_cast %22 : i32 to index
    %c24 = arith.constant 24 : index
    %99 = vector.load %arg9[%98, %c24] : memref<8x32xf32, #tpu.memory_space<vmem>>, vector<8x8xf32>
    %100 = arith.index_cast %22 : i32 to index
    %c24_56 = arith.constant 24 : index
    %101 = vector.load %arg10[%100, %c24_56] : memref<8x32xf32, #tpu.memory_space<vmem>>, vector<8x8xf32>
    %102 = arith.index_cast %22 : i32 to index
    %c24_57 = arith.constant 24 : index
    %103 = vector.load %arg11[%102, %c24_57] : memref<8x32xf32, #tpu.memory_space<vmem>>, vector<8x8xf32>
    %cst_58 = arith.constant dense<0.000000e+00> : vector<8x8xf32>
    %104 = tpu.matmul %99, %101, %cst_58 {dimension_numbers = #tpu.dot_dimension_numbers<[1], [1], [0], [0], [0, 0, 1, 0], [], []>} : vector<8x8xf32>, vector<8x8xf32>, vector<8x8xf32> -> vector<8x8xf32>
    %cst_59 = arith.constant dense<0xFF800000> : vector<8xf32>
    %105 = vector.multi_reduction <maximumf>, %104, %cst_59 [1] : vector<8x8xf32> to vector<8xf32>
    %106 = vector.shape_cast %105 : vector<8xf32> to vector<8x1xf32>
    %107 = vector.broadcast %106 : vector<8x1xf32> to vector<8x8xf32>
    %108 = arith.subf %104, %107 : vector<8x8xf32>
    %109 = math.exp %108 : vector<8x8xf32>
    %cst_60 = arith.constant dense<0.000000e+00> : vector<8xf32>
    %110 = vector.multi_reduction <add>, %109, %cst_60 [1] : vector<8x8xf32> to vector<8xf32>
    %111 = vector.shape_cast %110 : vector<8xf32> to vector<8x1xf32>
    %112 = tpu.reciprocal %111 {approx = true} : vector<8x1xf32> -> vector<8x1xf32>
    %113 = vector.broadcast %112 : vector<8x1xf32> to vector<8x8xf32>
    %114 = arith.mulf %109, %113 : vector<8x8xf32>
    %cst_61 = arith.constant dense<0.000000e+00> : vector<8x8xf32>
    %115 = tpu.matmul %114, %103, %cst_61 {dimension_numbers = #tpu.dot_dimension_numbers<[1], [0], [0], [1], [0, 0, 1, 1], [], []>} : vector<8x8xf32>, vector<8x8xf32>, vector<8x8xf32> -> vector<8x8xf32>
    %116 = arith.index_cast %22 : i32 to index
    %c0_62 = arith.constant 0 : index
    %117 = vector.load %arg12[%116, %c0_62] : memref<8x32xf32, #tpu.memory_space<vmem>>, vector<8x32xf32>
    %c24_63 = arith.constant 24 : index
    %c0_64 = arith.constant 0 : index
    %118 = vector.load %arg6[%c24_63, %c0_64] : memref<32x32xf32, #tpu.memory_space<vmem>>, vector<8x32xf32>
    %cst_65 = arith.constant dense<0.000000e+00> : vector<8x32xf32>
    %119 = tpu.matmul %115, %118, %cst_65 {dimension_numbers = #tpu.dot_dimension_numbers<[1], [0], [0], [1], [0, 0, 1, 1], [], []>} : vector<8x8xf32>, vector<8x32xf32>, vector<8x32xf32> -> vector<8x32xf32>
    %120 = arith.addf %117, %119 : vector<8x32xf32>
    %121 = arith.index_cast %22 : i32 to index
    %c0_66 = arith.constant 0 : index
    %122 = vector.load %arg12[%121, %c0_66] : memref<8x32xf32, #tpu.memory_space<vmem>>, vector<8x32xf32>
    tpu.vector_store %arg12[%121, %c0_66], %120 {strides = array<i32>} : memref<8x32xf32, #tpu.memory_space<vmem>>, vector<8x32xf32>,
    %c1_i32 = arith.constant 1 : i32
    %c0_67 = arith.constant 0 : index
    %c0_68 = arith.constant 0 : index
    %123 = vector.load %arg12[%c0_67, %c0_68] : memref<8x32xf32, #tpu.memory_space<vmem>>, vector<8x32xf32>
    %c0_69 = arith.constant 0 : index
    %c0_70 = arith.constant 0 : index
    %124 = vector.load %arg7[%c0_69, %c0_70] : memref<1x32xf32, #tpu.memory_space<vmem>>, vector<1x32xf32>
    %125 = vector.broadcast %124 : vector<1x32xf32> to vector<8x32xf32>
    %126 = arith.addf %123, %125 : vector<8x32xf32>
    %c0_71 = arith.constant 0 : index
    %c0_72 = arith.constant 0 : index
    %127 = vector.load %arg8[%c0_71, %c0_72] : memref<8x32xf32, #tpu.memory_space<vmem>>, vector<8x32xf32>
    tpu.vector_store %arg8[%c0_71, %c0_72], %126 {strides = array<i32>} : memref<8x32xf32, #tpu.memory_space<vmem>>, vector<8x32xf32>,
    return
  }
  func.func @transform_0(%arg0: i32) -> (i32, i32) {
    %c0_i32 = arith.constant 0 : i32
    %c0_i32_0 = arith.constant 0 : i32
    return %arg0, %c0_i32 : i32, i32
  }
  func.func @transform_1(%arg0: i32) -> (i32, i32) {
    %c0_i32 = arith.constant 0 : i32
    %c0_i32_0 = arith.constant 0 : i32
    %c0_i32_1 = arith.constant 0 : i32
    return %c0_i32, %c0_i32_0 : i32, i32
  }
  func.func @transform_2(%arg0: i32) -> (i32, i32) {
    %c0_i32 = arith.constant 0 : i32
    %c0_i32_0 = arith.constant 0 : i32
    %c0_i32_1 = arith.constant 0 : i32
    return %c0_i32, %c0_i32_0 : i32, i32
  }
  func.func @transform_3(%arg0: i32) -> (i32, i32) {
    %c0_i32 = arith.constant 0 : i32
    %c0_i32_0 = arith.constant 0 : i32
    %c0_i32_1 = arith.constant 0 : i32
    return %c0_i32, %c0_i32_0 : i32, i32
  }
  func.func @transform_4(%arg0: i32) -> (i32, i32) {
    %c0_i32 = arith.constant 0 : i32
    %c0_i32_0 = arith.constant 0 : i32
    %c0_i32_1 = arith.constant 0 : i32
    return %c0_i32, %c0_i32_0 : i32, i32
  }
  func.func @transform_5(%arg0: i32) -> (i32, i32) {
    %c0_i32 = arith.constant 0 : i32
    %c0_i32_0 = arith.constant 0 : i32
    %c0_i32_1 = arith.constant 0 : i32
    return %c0_i32, %c0_i32_0 : i32, i32
  }
  func.func @transform_6(%arg0: i32) -> (i32, i32) {
    %c0_i32 = arith.constant 0 : i32
    %c0_i32_0 = arith.constant 0 : i32
    %c0_i32_1 = arith.constant 0 : i32
    return %c0_i32, %c0_i32_0 : i32, i32
  }
  func.func @transform_7(%arg0: i32) -> (i32, i32) {
    %c0_i32 = arith.constant 0 : i32
    %c0_i32_0 = arith.constant 0 : i32
    return %arg0, %c0_i32 : i32, i32
  }
}

</mosaic_0001>

<llo_original>
// kernel: tpu_custom_call.1
$region0: #{tpu_custom_call.1}
  #allocation0 [shape = 'u32[]', space=smem, size = 0x4, offset = 0x4, fixed_abs, tag = 'smem constant byte address 0x4 - core index']
  #allocation1 [shape = 'u32[144,128]{1,0:T(1,128)}', space=vmem, size = 0x12000, scoped, tag = 'internal scratch']
  #allocation2 [shape = 'f32[8,32]{1,0:T(8,128)}', space=vmem, size = 0x1000, scoped, tag = 'scratch operand']
  #allocation3 [shape = 'f32[8,32]{1,0:T(8,128)}', space=vmem, size = 0x1000, scoped, tag = 'scratch operand']
  #allocation4 [shape = 'f32[8,32]{1,0:T(8,128)}', space=vmem, size = 0x1000, scoped, tag = 'scratch operand']
  #allocation5 [shape = 'f32[8,32]{1,0:T(8,128)}', space=vmem, size = 0x1000, scoped, tag = 'scratch operand']
  %s0 = inlined_call_operand.hbm [shape: f32[16,32], index: 0, kind: input, shape index: {}]
  %s1 = inlined_call_operand.hbm [shape: f32[32,32], index: 1, kind: input, shape index: {}]
  %s2 = inlined_call_operand.hbm [shape: f32[32,32], index: 2, kind: input, shape index: {}]
  %s3 = inlined_call_operand.hbm [shape: f32[32,32], index: 3, kind: input, shape index: {}]
  %s4 = inlined_call_operand.vmem [shape: f32[3,32], index: 4, kind: input, shape index: {}]
  %s5 = inlined_call_operand.hbm [shape: f32[32,32], index: 5, kind: input, shape index: {}]
  %s6 = inlined_call_operand.vmem [shape: f32[1,32], index: 6, kind: input, shape index: {}]
  %s7 = inlined_call_operand.hbm [shape: f32[16,32], index: 7, kind: output, shape index: {}]
  %s8 = sld [smem:[#allocation0]]
  $region81: #{tpu_custom_call.1} parent=0
    _
  %s10 = ssub.s32 1, %s8
  %s11 = scalar_select 0, %s10, %s8
  $region1: #{tpu_custom_call.1} parent=0
    #allocation6 [shape = 'u8[8192]{0}', space=vmem, size = 0x2000, scoped, tag = 'input window, operand 0']
    #allocation7 [shape = 's32[2]{0}', space=sflag, size = 0x8, scoped, tag = 'scoped memory for tpu_custom_call.1']
    #allocation8 [shape = 's32[2]{0}', space=sflag, size = 0x8, scoped, tag = 'scoped memory for tpu_custom_call.1']
    #allocation9 [shape = 'u8[16384]{0}', space=vmem, size = 0x4000, scoped, tag = 'input window, operand 1, single buffered']
    #allocation10 [shape = 's32[1]{0}', space=sflag, size = 0x4, scoped, tag = 'scoped memory for tpu_custom_call.1']
    #allocation11 [shape = 'u8[16384]{0}', space=vmem, size = 0x4000, scoped, tag = 'input window, operand 2, single buffered']
    #allocation12 [shape = 'u8[16384]{0}', space=vmem, size = 0x4000, scoped, tag = 'input window, operand 3, single buffered']
    #allocation13 [shape = 's32[1]{0}', space=sflag, size = 0x4, scoped, tag = 'scoped memory for tpu_custom_call.1']
    #allocation14 [shape = 'u8[16384]{0}', space=vmem, size = 0x4000, scoped, tag = 'input window, operand 5, single buffered']
    #allocation15 [shape = 'u8[8192]{0}', space=vmem, size = 0x2000, scoped, tag = 'output window, operand 0']
    %12 = vsyncpa [#allocation7], 0
    %s13 = scalar_lea.sflag [#allocation7], 1
    %14 = vsyncpa %s13, 0
    %15 = vsyncpa [#allocation10], 0
    %16 = vsyncpa [#allocation13], 0
    %17 = vsyncpa [#allocation8], 0
    %s18 = scalar_lea.sflag [#allocation8], 1
    %19 = vsyncpa %s18, 0
    loop: start=0, step=1, limit=4
    $region2: #{tpu_custom_call.1} parent=1 // loop_pre_header
      _
    $region3: #{tpu_custom_call.1} parent=1 // loop_header
      %s21 = sphi 0, %s25
      %p22 = scmp.ge.s32.totalorder %s21, 4
      %s31 = sphi 0, %s33
      %s34 = sphi 0, %s31
      %s35 = sphi 0, %s34
      %s51 = sphi 0, %s35
      %s55 = sphi 0, %s55
      %s57 = sphi 0, %s55
      %s58 = sphi 0, %s57
      %s72 = sphi 0, %s58
      %s76 = sphi 0, %s76
      %s78 = sphi 0, %s76
      %s79 = sphi 0, %s78
      %s93 = sphi 0, %s79
      %s97 = sphi 0, %s97
      %s99 = sphi 0, %s97
      %s100 = sphi 0, %s99
      %s114 = sphi 0, %s100
      %s118 = sphi 0, %s118
      %s120 = sphi 0, %s118
      %s121 = sphi 0, %s120
      %s135 = sphi 0, %s121
      %s139 = sphi 0, %s139
      %s141 = sphi 0, %s139
      %s142 = sphi 0, %s141
      %s156 = sphi 0, %s142
      %s160 = sphi 0, %s160
      %s162 = sphi 0, %s160
      %s163 = sphi 0, %s162
      %s177 = sphi 0, %s163
      %s183 = sphi 0, %s185
      %s186 = sphi 0, %s183
      %s187 = sphi 0, %s186
      %s203 = sphi 0, %s187
    $region4: #{tpu_custom_call.1} parent=1 // loop_header_branch
      %24 = sbr.rel (%p22) target = $region8
    $region5: #{tpu_custom_call.1} parent=1 // loop_body
      %s26 = ssub.s32 %s21, 1
      %s27 = ssub.s32 %s21, 2
      %s28 = sadd.s32 %s21, 1
      %s29 = ssub.s32 %s21, %s28
      %p30 = scmp.eq.s32.totalorder %s29, 0
      %s32 = sadd.s32 %s31, 1
      %s33 = scalar_select %p30, %s31, %s32
      %p36 = pneg %p30
      %p37 = scmp.eq.s32.totalorder %s21, 1
      %p38 = por %p36, %p37
      %p39 = scmp.ne.s32.totalorder %s31, %s34
      %p40 = scmp.eq.s32.totalorder %s21, 0
      %p41 = por %p39, %p40
      %p42 = scmp.ne.s32.totalorder %s31, %s34
      %p43 = scmp.eq.s32.totalorder %s26, 1
      %p44 = por %p42, %p43
      %p45 = scmp.ne.s32.totalorder %s34, %s35
      %p46 = scmp.eq.s32.totalorder %s26, 0
      %p47 = por %p45, %p46
      %p48 = scmp.ne.s32.totalorder %s34, %s35
      %p49 = scmp.eq.s32.totalorder %s27, 1
      %p50 = por %p48, %p49
      %p52 = scmp.ne.s32.totalorder %s35, %s51
      %p53 = scmp.eq.s32.totalorder %s27, 0
      %p54 = por %p52, %p53
      %s56 = sadd.s32 %s55, 1
      %p59 = scmp.eq.s32.totalorder %s21, 1
      %p60 = scmp.ne.s32.totalorder %s55, %s57
      %p61 = scmp.eq.s32.totalorder %s21, 0
      %p62 = por %p60, %p61
      %p63 = scmp.ne.s32.totalorder %s55, %s57
      %p64 = scmp.eq.s32.totalorder %s26, 1
      %p65 = por %p63, %p64
      %p66 = scmp.ne.s32.totalorder %s57, %s58
      %p67 = scmp.eq.s32.totalorder %s26, 0
      %p68 = por %p66, %p67
      %p69 = scmp.ne.s32.totalorder %s57, %s58
      %p70 = scmp.eq.s32.totalorder %s27, 1
      %p71 = por %p69, %p70
      %p73 = scmp.ne.s32.totalorder %s58, %s72
      %p74 = scmp.eq.s32.totalorder %s27, 0
      %p75 = por %p73, %p74
      %s77 = sadd.s32 %s76, 1
      %p80 = scmp.eq.s32.totalorder %s21, 1
      %p81 = scmp.ne.s32.totalorder %s76, %s78
      %p82 = scmp.eq.s32.totalorder %s21, 0
      %p83 = por %p81, %p82
      %p84 = scmp.ne.s32.totalorder %s76, %s78
      %p85 = scmp.eq.s32.totalorder %s26, 1
      %p86 = por %p84, %p85
      %p87 = scmp.ne.s32.totalorder %s78, %s79
      %p88 = scmp.eq.s32.totalorder %s26, 0
      %p89 = por %p87, %p88
      %p90 = scmp.ne.s32.totalorder %s78, %s79
      %p91 = scmp.eq.s32.totalorder %s27, 1
      %p92 = por %p90, %p91
      %p94 = scmp.ne.s32.totalorder %s79, %s93
      %p95 = scmp.eq.s32.totalorder %s27, 0
      %p96 = por %p94, %p95
      %s98 = sadd.s32 %s97, 1
      %p101 = scmp.eq.s32.totalorder %s21, 1
      %p102 = scmp.ne.s32.totalorder %s97, %s99
      %p103 = scmp.eq.s32.totalorder %s21, 0
      %p104 = por %p102, %p103
      %p105 = scmp.ne.s32.totalorder %s97, %s99
      %p106 = scmp.eq.s32.totalorder %s26, 1
      %p107 = por %p105, %p106
      %p108 = scmp.ne.s32.totalorder %s99, %s100
      %p109 = scmp.eq.s32.totalorder %s26, 0
      %p110 = por %p108, %p109
      %p111 = scmp.ne.s32.totalorder %s99, %s100
      %p112 = scmp.eq.s32.totalorder %s27, 1
      %p113 = por %p111, %p112
      %p115 = scmp.ne.s32.totalorder %s100, %s114
      %p116 = scmp.eq.s32.totalorder %s27, 0
      %p117 = por %p115, %p116
      %s119 = sadd.s32 %s118, 1
      %p122 = scmp.eq.s32.totalorder %s21, 1
      %p123 = scmp.ne.s32.totalorder %s118, %s120
      %p124 = scmp.eq.s32.totalorder %s21, 0
      %p125 = por %p123, %p124
      %p126 = scmp.ne.s32.totalorder %s118, %s120
      %p127 = scmp.eq.s32.totalorder %s26, 1
      %p128 = por %p126, %p127
      %p129 = scmp.ne.s32.totalorder %s120, %s121
      %p130 = scmp.eq.s32.totalorder %s26, 0
      %p131 = por %p129, %p130
      %p132 = scmp.ne.s32.totalorder %s120, %s121
      %p133 = scmp.eq.s32.totalorder %s27, 1
      %p134 = por %p132, %p133
      %p136 = scmp.ne.s32.totalorder %s121, %s135
      %p137 = scmp.eq.s32.totalorder %s27, 0
      %p138 = por %p136, %p137
      %s140 = sadd.s32 %s139, 1
      %p143 = scmp.eq.s32.totalorder %s21, 1
      %p144 = scmp.ne.s32.totalorder %s139, %s141
      %p145 = scmp.eq.s32.totalorder %s21, 0
      %p146 = por %p144, %p145
      %p147 = scmp.ne.s32.totalorder %s139, %s141
      %p148 = scmp.eq.s32.totalorder %s26, 1
      %p149 = por %p147, %p148
      %p150 = scmp.ne.s32.totalorder %s141, %s142
      %p151 = scmp.eq.s32.totalorder %s26, 0
      %p152 = por %p150, %p151
      %p153 = scmp.ne.s32.totalorder %s141, %s142
      %p154 = scmp.eq.s32.totalorder %s27, 1
      %p155 = por %p153, %p154
      %p157 = scmp.ne.s32.totalorder %s142, %s156
      %p158 = scmp.eq.s32.totalorder %s27, 0
      %p159 = por %p157, %p158
      %s161 = sadd.s32 %s160, 1
      %p164 = scmp.eq.s32.totalorder %s21, 1
      %p165 = scmp.ne.s32.totalorder %s160, %s162
      %p166 = scmp.eq.s32.totalorder %s21, 0
      %p167 = por %p165, %p166
      %p168 = scmp.ne.s32.totalorder %s160, %s162
      %p169 = scmp.eq.s32.totalorder %s26, 1
      %p170 = por %p168, %p169
      %p171 = scmp.ne.s32.totalorder %s162, %s163
      %p172 = scmp.eq.s32.totalorder %s26, 0
      %p173 = por %p171, %p172
      %p174 = scmp.ne.s32.totalorder %s162, %s163
      %p175 = scmp.eq.s32.totalorder %s27, 1
      %p176 = por %p174, %p175
      %p178 = scmp.ne.s32.totalorder %s163, %s177
      %p179 = scmp.eq.s32.totalorder %s27, 0
      %p180 = por %p178, %p179
      %s181 = ssub.s32 %s21, %s28
      %p182 = scmp.eq.s32.totalorder %s181, 0
      %s184 = sadd.s32 %s183, 1
      %s185 = scalar_select %p182, %s183, %s184
      %p188 = pneg %p182
      %p189 = scmp.eq.s32.totalorder %s21, 1
      %p190 = por %p188, %p189
      %p191 = scmp.ne.s32.totalorder %s183, %s186
      %p192 = scmp.eq.s32.totalorder %s21, 0
      %p193 = por %p191, %p192
      %p194 = scmp.ne.s32.totalorder %s183, %s186
      %p195 = scmp.eq.s32.totalorder %s26, 1
      %p196 = por %p194, %p195
      %p197 = scmp.ne.s32.totalorder %s186, %s187
      %p198 = scmp.eq.s32.totalorder %s26, 0
      %p199 = por %p197, %p198
      %p200 = scmp.ne.s32.totalorder %s186, %s187
      %p201 = scmp.eq.s32.totalorder %s27, 1
      %p202 = por %p200, %p201
      %p204 = scmp.ne.s32.totalorder %s187, %s203
      %p205 = scmp.eq.s32.totalorder %s27, 0
      %p206 = por %p204, %p205
      %p207 = scmp.le.s32.totalorder 1, %s21
      %p208 = scmp.lt.s32.totalorder %s21, 3
      %p209 = pnand %p207, %p208
      %p210 = pneg %p209
      // Predicated region
      $region9: #{tpu_custom_call.1} parent=5 // pred_check
        _
      $region10: #{tpu_custom_call.1} parent=5 // pred_check_branch
        %212 = sbr.rel (%p209) target = $region12
      $region11: #{tpu_custom_call.1} parent=5 // pred_region
        %s213 = ssub.s32 %s21, 1
        // Predicated region
        $region13: #{tpu_custom_call.1} parent=11 // pred_check
          %p214 = pneg %p68
        $region14: #{tpu_custom_call.1} parent=11 // pred_check_branch
          %216 = sbr.rel (%p214) target = $region16
        $region15: #{tpu_custom_call.1} parent=11 // pred_region
          %s218 = ssub.s32 512, 512
          %219 = vsyncadd [#allocation10], %s218
          %s220 = sshll.u32 [#allocation9], 4
          %s221 = int_to_ptr.vmem [resolvable:$true] %s220
          %226 = dma.hbm_to_vmem [thread:$0]  %s1, 512, %s221, [#allocation10], 128, 128, 8
        $region16: #{tpu_custom_call.1} parent=11 // pred_fallthru
          _
        // Predicated region
        $region17: #{tpu_custom_call.1} parent=11 // pred_check
          %p227 = pneg %p89
        $region18: #{tpu_custom_call.1} parent=11 // pred_check_branch
          %229 = sbr.rel (%p227) target = $region20
        $region19: #{tpu_custom_call.1} parent=11 // pred_region
          %s231 = ssub.s32 512, 512
          %232 = vsyncadd [#allocation10], %s231
          %s233 = sshll.u32 [#allocation11], 4
          %s234 = int_to_ptr.vmem [resolvable:$true] %s233
          %239 = dma.hbm_to_vmem [thread:$0]  %s2, 512, %s234, [#allocation10], 128, 128, 8
        $region20: #{tpu_custom_call.1} parent=11 // pred_fallthru
          _
        // Predicated region
        $region21: #{tpu_custom_call.1} parent=11 // pred_check
          %p240 = pneg %p110
        $region22: #{tpu_custom_call.1} parent=11 // pred_check_branch
          %242 = sbr.rel (%p240) target = $region24
        $region23: #{tpu_custom_call.1} parent=11 // pred_region
          %s244 = ssub.s32 512, 512
          %245 = vsyncadd [#allocation13], %s244
          %s246 = sshll.u32 [#allocation12], 4
          %s247 = int_to_ptr.vmem [resolvable:$true] %s246
          %252 = dma.hbm_to_vmem [thread:$0]  %s3, 512, %s247, [#allocation13], 128, 128, 8
        $region24: #{tpu_custom_call.1} parent=11 // pred_fallthru
          _
        // Predicated region
        $region25: #{tpu_custom_call.1} parent=11 // pred_check
          %p253 = pneg %p131
        $region26: #{tpu_custom_call.1} parent=11 // pred_check_branch
          %255 = sbr.rel (%p253) target = $region28
        $region27: #{tpu_custom_call.1} parent=11 // pred_region
          _
        $region28: #{tpu_custom_call.1} parent=11 // pred_fallthru
          _
        // Predicated region
        $region29: #{tpu_custom_call.1} parent=11 // pred_check
          %p256 = pneg %p152
        $region30: #{tpu_custom_call.1} parent=11 // pred_check_branch
          %258 = sbr.rel (%p256) target = $region32
        $region31: #{tpu_custom_call.1} parent=11 // pred_region
          %s260 = ssub.s32 512, 512
          %261 = vsyncadd [#allocation13], %s260
          %s262 = sshll.u32 [#allocation14], 4
          %s263 = int_to_ptr.vmem [resolvable:$true] %s262
          %268 = dma.hbm_to_vmem [thread:$0]  %s5, 512, %s263, [#allocation13], 128, 128, 8
        $region32: #{tpu_custom_call.1} parent=11 // pred_fallthru
          _
        // Predicated region
        $region33: #{tpu_custom_call.1} parent=11 // pred_check
          %p269 = pneg %p173
        $region34: #{tpu_custom_call.1} parent=11 // pred_check_branch
          %271 = sbr.rel (%p269) target = $region36
        $region35: #{tpu_custom_call.1} parent=11 // pred_region
          _
        $region36: #{tpu_custom_call.1} parent=11 // pred_fallthru
          _
      $region12: #{tpu_custom_call.1} parent=5 // pred_fallthru
        _
      %p272 = scmp.lt.s32.totalorder %s21, 2
      // Predicated region
      $region37: #{tpu_custom_call.1} parent=5 // pred_check
        %p273 = pneg %p272
      $region38: #{tpu_custom_call.1} parent=5 // pred_check_branch
        %275 = sbr.rel (%p273) target = $region40
      $region39: #{tpu_custom_call.1} parent=5 // pred_region
        // Predicated region
        $region41: #{tpu_custom_call.1} parent=39 // pred_check
          %p276 = pneg %p41
        $region42: #{tpu_custom_call.1} parent=39 // pred_check_branch
          %278 = sbr.rel (%p276) target = $region44
        $region43: #{tpu_custom_call.1} parent=39 // pred_region
          %s279 = sand.u32 %s31, 1
          %s280 = scalar_lea.sflag [#allocation7], %s279
          %s281 = sand.u32 %s31, 1
          %s282 = smul.addr %s281, 8
          %s283 = scalar_lea.vmem [#allocation6], %s282
          %s285 = ssub.s32 128, 128
          %286 = vsyncadd %s280, %s285
          %s287 = smul.addr %s21, 128
          %s288 = scalar_lea.hbm %s0, %s287
          %s290 = sshll.u32 %s283, 4
          %s291 = int_to_ptr.vmem [resolvable:$true] %s290
          %293 = dma.hbm_to_vmem [thread:$0]  %s288, 128, %s291, %s280
        $region44: #{tpu_custom_call.1} parent=39 // pred_fallthru
          _
      $region40: #{tpu_custom_call.1} parent=5 // pred_fallthru
        _
      %p294 = scmp.le.s32.totalorder 1, %s21
      %p295 = scmp.lt.s32.totalorder %s21, 3
      %p296 = pnand %p294, %p295
      %p297 = pneg %p296
      // Predicated region
      $region45: #{tpu_custom_call.1} parent=5 // pred_check
        _
      $region46: #{tpu_custom_call.1} parent=5 // pred_check_branch
        %299 = sbr.rel (%p296) target = $region48
      $region47: #{tpu_custom_call.1} parent=5 // pred_region
        %s300 = ssub.s32 %s21, 1
        %s301 = sand.u32 %s34, 1
        %s302 = scalar_lea.sflag [#allocation7], %s301
        %s303 = sand.u32 %s34, 1
        %s304 = smul.addr %s303, 8
        %s305 = scalar_lea.vmem [#allocation6], %s304
        // Predicated region
        $region49: #{tpu_custom_call.1} parent=47 // pred_check
          %p306 = pneg %p47
        $region50: #{tpu_custom_call.1} parent=47 // pred_check_branch
          %308 = sbr.rel (%p306) target = $region52
        $region51: #{tpu_custom_call.1} parent=47 // pred_region
          %309 = dma.done %s302, 128
        $region52: #{tpu_custom_call.1} parent=47 // pred_fallthru
          _
        // Predicated region
        $region53: #{tpu_custom_call.1} parent=47 // pred_check
          %p310 = pneg %p68
        $region54: #{tpu_custom_call.1} parent=47 // pred_check_branch
          %312 = sbr.rel (%p310) target = $region56
        $region55: #{tpu_custom_call.1} parent=47 // pred_region
          %313 = dma.done [#allocation10], 512
        $region56: #{tpu_custom_call.1} parent=47 // pred_fallthru
          _
        // Predicated region
        $region57: #{tpu_custom_call.1} parent=47 // pred_check
          %p314 = pneg %p89
        $region58: #{tpu_custom_call.1} parent=47 // pred_check_branch
          %316 = sbr.rel (%p314) target = $region60
        $region59: #{tpu_custom_call.1} parent=47 // pred_region
          %317 = dma.done [#allocation10], 512
        $region60: #{tpu_custom_call.1} parent=47 // pred_fallthru
          _
        // Predicated region
        $region61: #{tpu_custom_call.1} parent=47 // pred_check
          %p318 = pneg %p110
        $region62: #{tpu_custom_call.1} parent=47 // pred_check_branch
          %320 = sbr.rel (%p318) target = $region64
        $region63: #{tpu_custom_call.1} parent=47 // pred_region
          %321 = dma.done [#allocation13], 512
        $region64: #{tpu_custom_call.1} parent=47 // pred_fallthru
          _
        // Predicated region
        $region65: #{tpu_custom_call.1} parent=47 // pred_check
          %p322 = pneg %p152
        $region66: #{tpu_custom_call.1} parent=47 // pred_check_branch
          %324 = sbr.rel (%p322) target = $region68
        $region67: #{tpu_custom_call.1} parent=47 // pred_region
          %325 = dma.done [#allocation13], 512
        $region68: #{tpu_custom_call.1} parent=47 // pred_fallthru
          _
        %s326 = sand.u32 %s34, 1
        %s327 = scalar_lea.sflag [#allocation7], %s326
        %s328 = sand.u32 %s34, 1
        %s329 = smul.addr %s328, 8
        %s330 = scalar_lea.vmem [#allocation6], %s329
        %p331 = pneg %p47
        %p332 = pneg %p44
        %p333 = pneg %p68
        %p334 = pneg %p65
        %p335 = pneg %p89
        %p336 = pneg %p86
        %p337 = pneg %p110
        %p338 = pneg %p107
        %p339 = pneg %p131
        %p340 = pneg %p128
        %p341 = pneg %p152
        %p342 = pneg %p149
        %p343 = pneg %p173
        %p344 = pneg %p170
        %p345 = pneg %p199
        %p346 = pneg %p196
        %s347 = sand.u32 %s186, 1
        %s348 = scalar_lea.sflag [#allocation8], %s347
        %s349 = sand.u32 %s186, 1
        %s350 = smul.addr %s349, 8
        %s351 = scalar_lea.vmem [#allocation15], %s350
        %v352 = vld [vmem:[%s305] sm:$0xff]
        %v353 = vld [vmem:[#allocation9] sm:$0xff]
        %v354 = vld [vmem:[#allocation9 + $0x8] sm:$0xff]
        %v355 = vld [vmem:[#allocation9 + $0x10] sm:$0xff]
        %v356 = vld [vmem:[#allocation9 + $0x18] sm:$0xff]
        %v357 = vld [vmem:[%s4] sm:$0x1]
        %v358 = vlaneseq
        %v359 = vshrl.u32 %v358, 7
        %v360 = vsub.s32 0, %v359
        %v361 = vrot.slane %v357, %v360
        %vm362 = vcmask 261120
        %v364 = vsel %vm362, %v352, 0
        %366 = vmatprep.subr.mxu0 0.0
        %367 = vmatpush1.msra.mxu0 %v353
        %368 = vmatprep.subr.mxu0 0.0
        %369 = vmatpush1.msra.mxu0 %v354
        %370 = vmatprep.subr.mxu0 0.0
        %371 = vmatpush1.msra.mxu0 %v355
        %372 = vmatprep.subr.mxu0 0.0
        %373 = vmatpush1.msra.mxu0 %v356
        %374 = vmatprep.subr.mxu0 0.0
        %375 = vmatpush1.msra.mxu0 0.0
        %376 = vmatprep.subr.mxu0 0.0
        %377 = vmatpush1.msra.mxu0 0.0
        %378 = vmatprep.subr.mxu0 0.0
        %379 = vmatpush1.msra.mxu0 0.0
        %380 = vmatprep.subr.mxu0 0.0
        %381 = vmatpush1.msra.mxu0 0.0
        %382 = vmatprep.subr.mxu0 0.0
        %383 = vmatpush1.msra.mxu0 0.0
        %384 = vmatprep.subr.mxu0 0.0
        %385 = vmatpush1.msra.mxu0 0.0
        %386 = vmatprep.subr.mxu0 0.0
        %387 = vmatpush1.msra.mxu0 0.0
        %388 = vmatprep.subr.mxu0 0.0
        %389 = vmatpush1.msra.mxu0 0.0
        %390 = vmatprep.subr.mxu0 0.0
        %391 = vmatpush1.msra.mxu0 0.0
        %392 = vmatprep.subr.mxu0 0.0
        %393 = vmatpush1.msra.mxu0 0.0
        %394 = vmatprep.subr.mxu0 0.0
        %395 = vmatpush1.msra.mxu0 0.0
        %396 = vmatprep.subr.mxu0 0.0
        %397 = vmatpush1.msra.mxu0 0.0
        %398 = vmatprep.subr.mxu0 0.0
        %399 = vmatpush1.msra.mxu0 0.0
        %400 = vmatprep.subr.mxu0 0.0
        %401 = vmatpush1.msra.mxu0 0.0
        %402 = vmatprep.subr.mxu0 0.0
        %403 = vmatpush1.msra.mxu0 0.0
        %404 = vmatprep.subr.mxu0 0.0
        %405 = vmatpush1.msra.mxu0 0.0
        %406 = vmatprep.subr.mxu0 0.0
        %407 = vmatpush1.msra.mxu0 0.0
        %408 = vmatprep.subr.mxu0 0.0
        %409 = vmatpush1.msra.mxu0 0.0
        %410 = vmatprep.subr.mxu0 0.0
        %411 = vmatpush1.msra.mxu0 0.0
        %412 = vmatprep.subr.mxu0 0.0
        %413 = vmatpush1.msra.mxu0 0.0
        %414 = vmatprep.subr.mxu0 0.0
        %415 = vmatpush1.msra.mxu0 0.0
        %416 = vmatprep.subr.mxu0 0.0
        %417 = vmatpush1.msra.mxu0 0.0
        %418 = vmatprep.subr.mxu0 0.0
        %419 = vmatpush1.msra.mxu0 0.0
        %420 = vmatprep.subr.mxu0 0.0
        %421 = vmatpush1.msra.mxu0 0.0
        %422 = vmatprep.subr.mxu0 0.0
        %423 = vmatpush1.msra.mxu0 0.0
        %424 = vmatprep.subr.mxu0 0.0
        %425 = vmatpush1.msra.mxu0 0.0
        %426 = vmatprep.subr.mxu0 0.0
        %427 = vmatpush1.msra.mxu0 0.0
        %428 = vmatprep.subr.mxu0 0.0
        %429 = vmatpush1.msra.mxu0 0.0
        %430 = vmatprep.mubr.f32.mxu0 0.0
        %431 = vmatmul.mubr.f32.gmra.mrb[0].mxu0 %v364
        %v432 = vpop.f32.mrb[0].mxu0
        %v433 = vadd.f32 %v361, %v432
        %v434 = vpop.f32.mrb[0].mxu0
        %435 = vdwg.mxu0
        %v436 = vld [vmem:[#allocation11] sm:$0xff]
        %v437 = vld [vmem:[#allocation11 + $0x8] sm:$0xff]
        %v438 = vld [vmem:[#allocation11 + $0x10] sm:$0xff]
        %v439 = vld [vmem:[#allocation11 + $0x18] sm:$0xff]
        %v440 = vld [vmem:[%s4 + $0x1] sm:$0x1]
        %v441 = vlaneseq
        %v442 = vshrl.u32 %v441, 7
        %v443 = vsub.s32 0, %v442
        %v444 = vrot.slane %v440, %v443
        %445 = vmatprep.subr.mxu0 0.0
        %446 = vmatpush1.msra.mxu0 %v436
        %447 = vmatprep.subr.mxu0 0.0
        %448 = vmatpush1.msra.mxu0 %v437
        %449 = vmatprep.subr.mxu0 0.0
        %450 = vmatpush1.msra.mxu0 %v438
        %451 = vmatprep.subr.mxu0 0.0
        %452 = vmatpush1.msra.mxu0 %v439
        %453 = vmatprep.subr.mxu0 0.0
        %454 = vmatpush1.msra.mxu0 0.0
        %455 = vmatprep.subr.mxu0 0.0
        %456 = vmatpush1.msra.mxu0 0.0
        %457 = vmatprep.subr.mxu0 0.0
        %458 = vmatpush1.msra.mxu0 0.0
        %459 = vmatprep.subr.mxu0 0.0
        %460 = vmatpush1.msra.mxu0 0.0
        %461 = vmatprep.subr.mxu0 0.0
        %462 = vmatpush1.msra.mxu0 0.0
        %463 = vmatprep.subr.mxu0 0.0
        %464 = vmatpush1.msra.mxu0 0.0
        %465 = vmatprep.subr.mxu0 0.0
        %466 = vmatpush1.msra.mxu0 0.0
        %467 = vmatprep.subr.mxu0 0.0
        %468 = vmatpush1.msra.mxu0 0.0
        %469 = vmatprep.subr.mxu0 0.0
        %470 = vmatpush1.msra.mxu0 0.0
        %471 = vmatprep.subr.mxu0 0.0
        %472 = vmatpush1.msra.mxu0 0.0
        %473 = vmatprep.subr.mxu0 0.0
        %474 = vmatpush1.msra.mxu0 0.0
        %475 = vmatprep.subr.mxu0 0.0
        %476 = vmatpush1.msra.mxu0 0.0
        %477 = vmatprep.subr.mxu0 0.0
        %478 = vmatpush1.msra.mxu0 0.0
        %479 = vmatprep.subr.mxu0 0.0
        %480 = vmatpush1.msra.mxu0 0.0
        %481 = vmatprep.subr.mxu0 0.0
        %482 = vmatpush1.msra.mxu0 0.0
        %483 = vmatprep.subr.mxu0 0.0
        %484 = vmatpush1.msra.mxu0 0.0
        %485 = vmatprep.subr.mxu0 0.0
        %486 = vmatpush1.msra.mxu0 0.0
        %487 = vmatprep.subr.mxu0 0.0
        %488 = vmatpush1.msra.mxu0 0.0
        %489 = vmatprep.subr.mxu0 0.0
        %490 = vmatpush1.msra.mxu0 0.0
        %491 = vmatprep.subr.mxu0 0.0
        %492 = vmatpush1.msra.mxu0 0.0
        %493 = vmatprep.subr.mxu0 0.0
        %494 = vmatpush1.msra.mxu0 0.0
        %495 = vmatprep.subr.mxu0 0.0
        %496 = vmatpush1.msra.mxu0 0.0
        %497 = vmatprep.subr.mxu0 0.0
        %498 = vmatpush1.msra.mxu0 0.0
        %499 = vmatprep.subr.mxu0 0.0
        %500 = vmatpush1.msra.mxu0 0.0
        %501 = vmatprep.subr.mxu0 0.0
        %502 = vmatpush1.msra.mxu0 0.0
        %503 = vmatprep.subr.mxu0 0.0
        %504 = vmatpush1.msra.mxu0 0.0
        %505 = vmatprep.subr.mxu0 0.0
        %506 = vmatpush1.msra.mxu0 0.0
        %507 = vmatprep.subr.mxu0 0.0
        %508 = vmatpush1.msra.mxu0 0.0
        %509 = vmatprep.mubr.f32.mxu0 0.0
        %510 = vmatmul.mubr.f32.gmra.mrb[0].mxu0 %v364
        %v511 = vpop.f32.mrb[0].mxu0
        %v512 = vadd.f32 %v444, %v511
        %v513 = vpop.f32.mrb[0].mxu0
        %514 = vdwg.mxu0
        %v515 = vld [vmem:[#allocation12] sm:$0xff]
        %v516 = vld [vmem:[#allocation12 + $0x8] sm:$0xff]
        %v517 = vld [vmem:[#allocation12 + $0x10] sm:$0xff]
        %v518 = vld [vmem:[#allocation12 + $0x18] sm:$0xff]
        %v519 = vld [vmem:[%s4 + $0x2] sm:$0x1]
        %v520 = vlaneseq
        %v521 = vshrl.u32 %v520, 7
        %v522 = vsub.s32 0, %v521
        %v523 = vrot.slane %v519, %v522
        %524 = vmatprep.subr.mxu0 0.0
        %525 = vmatpush1.msra.mxu0 %v515
        %526 = vmatprep.subr.mxu0 0.0
        %527 = vmatpush1.msra.mxu0 %v516
        %528 = vmatprep.subr.mxu0 0.0
        %529 = vmatpush1.msra.mxu0 %v517
        %530 = vmatprep.subr.mxu0 0.0
        %531 = vmatpush1.msra.mxu0 %v518
        %532 = vmatprep.subr.mxu0 0.0
        %533 = vmatpush1.msra.mxu0 0.0
        %534 = vmatprep.subr.mxu0 0.0
        %535 = vmatpush1.msra.mxu0 0.0
        %536 = vmatprep.subr.mxu0 0.0
        %537 = vmatpush1.msra.mxu0 0.0
        %538 = vmatprep.subr.mxu0 0.0
        %539 = vmatpush1.msra.mxu0 0.0
        %540 = vmatprep.subr.mxu0 0.0
        %541 = vmatpush1.msra.mxu0 0.0
        %542 = vmatprep.subr.mxu0 0.0
        %543 = vmatpush1.msra.mxu0 0.0
        %544 = vmatprep.subr.mxu0 0.0
        %545 = vmatpush1.msra.mxu0 0.0
        %546 = vmatprep.subr.mxu0 0.0
        %547 = vmatpush1.msra.mxu0 0.0
        %548 = vmatprep.subr.mxu0 0.0
        %549 = vmatpush1.msra.mxu0 0.0
        %550 = vmatprep.subr.mxu0 0.0
        %551 = vmatpush1.msra.mxu0 0.0
        %552 = vmatprep.subr.mxu0 0.0
        %553 = vmatpush1.msra.mxu0 0.0
        %554 = vmatprep.subr.mxu0 0.0
        %555 = vmatpush1.msra.mxu0 0.0
        %556 = vmatprep.subr.mxu0 0.0
        %557 = vmatpush1.msra.mxu0 0.0
        %558 = vmatprep.subr.mxu0 0.0
        %559 = vmatpush1.msra.mxu0 0.0
        %560 = vmatprep.subr.mxu0 0.0
        %561 = vmatpush1.msra.mxu0 0.0
        %562 = vmatprep.subr.mxu0 0.0
        %563 = vmatpush1.msra.mxu0 0.0
        %564 = vmatprep.subr.mxu0 0.0
        %565 = vmatpush1.msra.mxu0 0.0
        %566 = vmatprep.subr.mxu0 0.0
        %567 = vmatpush1.msra.mxu0 0.0
        %568 = vmatprep.subr.mxu0 0.0
        %569 = vmatpush1.msra.mxu0 0.0
        %570 = vmatprep.subr.mxu0 0.0
        %571 = vmatpush1.msra.mxu0 0.0
        %572 = vmatprep.subr.mxu0 0.0
        %573 = vmatpush1.msra.mxu0 0.0
        %574 = vmatprep.subr.mxu0 0.0
        %575 = vmatpush1.msra.mxu0 0.0
        %576 = vmatprep.subr.mxu0 0.0
        %577 = vmatpush1.msra.mxu0 0.0
        %578 = vmatprep.subr.mxu0 0.0
        %579 = vmatpush1.msra.mxu0 0.0
        %580 = vmatprep.subr.mxu0 0.0
        %581 = vmatpush1.msra.mxu0 0.0
        %582 = vmatprep.subr.mxu0 0.0
        %583 = vmatpush1.msra.mxu0 0.0
        %584 = vmatprep.subr.mxu0 0.0
        %585 = vmatpush1.msra.mxu0 0.0
        %586 = vmatprep.subr.mxu0 0.0
        %587 = vmatpush1.msra.mxu0 0.0
        %588 = vmatprep.mubr.f32.mxu0 0.0
        %589 = vmatmul.mubr.f32.gmra.mrb[0].mxu0 %v364
        %v590 = vpop.f32.mrb[0].mxu0
        %v591 = vadd.f32 %v523, %v590
        %v592 = vpop.f32.mrb[0].mxu0
        %593 = vdwg.mxu0
        %594 = vst.msk [vmem:[#allocation2] sm:$0xff] %vm362, %v433
        %595 = vst.msk [vmem:[#allocation3] sm:$0xff] %vm362, %v512
        %596 = vst.msk [vmem:[#allocation4] sm:$0xff] %vm362, %v591
        %597 = vst.msk [vmem:[#allocation5] sm:$0xff] %vm362, 0.0
        %v598 = vld [vmem:[#allocation2] sm:$0xff]
        %v599 = vld [vmem:[#allocation3] sm:$0xff]
        %v600 = vld [vmem:[#allocation4] sm:$0xff]
        %vm601 = vcmask 64512
        %v603 = vsel %vm601, %v598, 0
        %v606 = vsel %vm601, %v599, 0
        %608 = vmatprep.subr.mxu0 0.0
        %609 = vmatpush1.xpose.msra.mxu0 %v606
        %610 = vmatprep.subr.mxu0 0.0
        %611 = vmatpush1.xpose.msra.mxu0 0.0
        %612 = vmatprep.subr.mxu0 0.0
        %613 = vmatpush1.xpose.msra.mxu0 0.0
        %614 = vmatprep.subr.mxu0 0.0
        %615 = vmatpush1.xpose.msra.mxu0 0.0
        %616 = vmatprep.subr.mxu0 0.0
        %617 = vmatpush1.xpose.msra.mxu0 0.0
        %618 = vmatprep.subr.mxu0 0.0
        %619 = vmatpush1.xpose.msra.mxu0 0.0
        %620 = vmatprep.subr.mxu0 0.0
        %621 = vmatpush1.xpose.msra.mxu0 0.0
        %622 = vmatprep.subr.mxu0 0.0
        %623 = vmatpush1.xpose.msra.mxu0 0.0
        %624 = vmatprep.subr.mxu0 0.0
        %625 = vmatpush1.xpose.msra.mxu0 0.0
        %626 = vmatprep.subr.mxu0 0.0
        %627 = vmatpush1.xpose.msra.mxu0 0.0
        %628 = vmatprep.subr.mxu0 0.0
        %629 = vmatpush1.xpose.msra.mxu0 0.0
        %630 = vmatprep.subr.mxu0 0.0
        %631 = vmatpush1.xpose.msra.mxu0 0.0
        %632 = vmatprep.subr.mxu0 0.0
        %633 = vmatpush1.xpose.msra.mxu0 0.0
        %634 = vmatprep.subr.mxu0 0.0
        %635 = vmatpush1.xpose.msra.mxu0 0.0
        %636 = vmatprep.subr.mxu0 0.0
        %637 = vmatpush1.xpose.msra.mxu0 0.0
        %638 = vmatprep.subr.mxu0 0.0
        %639 = vmatpush1.xpose.msra.mxu0 0.0
        %640 = vmatprep.subr.mxu0 0.0
        %641 = vmatpush1.xpose.msra.mxu0 0.0
        %642 = vmatprep.subr.mxu0 0.0
        %643 = vmatpush1.xpose.msra.mxu0 0.0
        %644 = vmatprep.subr.mxu0 0.0
        %645 = vmatpush1.xpose.msra.mxu0 0.0
        %646 = vmatprep.subr.mxu0 0.0
        %647 = vmatpush1.xpose.msra.mxu0 0.0
        %648 = vmatprep.subr.mxu0 0.0
        %649 = vmatpush1.xpose.msra.mxu0 0.0
        %650 = vmatprep.subr.mxu0 0.0
        %651 = vmatpush1.xpose.msra.mxu0 0.0
        %652 = vmatprep.subr.mxu0 0.0
        %653 = vmatpush1.xpose.msra.mxu0 0.0
        %654 = vmatprep.subr.mxu0 0.0
        %655 = vmatpush1.xpose.msra.mxu0 0.0
        %656 = vmatprep.subr.mxu0 0.0
        %657 = vmatpush1.xpose.msra.mxu0 0.0
        %658 = vmatprep.subr.mxu0 0.0
        %659 = vmatpush1.xpose.msra.mxu0 0.0
        %660 = vmatprep.subr.mxu0 0.0
        %661 = vmatpush1.xpose.msra.mxu0 0.0
        %662 = vmatprep.subr.mxu0 0.0
        %663 = vmatpush1.xpose.msra.mxu0 0.0
        %664 = vmatprep.subr.mxu0 0.0
        %665 = vmatpush1.xpose.msra.mxu0 0.0
        %666 = vmatprep.subr.mxu0 0.0
        %667 = vmatpush1.xpose.msra.mxu0 0.0
        %668 = vmatprep.subr.mxu0 0.0
        %669 = vmatpush1.xpose.msra.mxu0 0.0
        %670 = vmatprep.subr.mxu0 0.0
        %671 = vmatpush1.xpose.msra.mxu0 0.0
        %672 = vmatprep.mubr.f32.mxu0 0.0
        %673 = vmatmul.mubr.f32.gmra.mrb[0].mxu0 %v603
        %v674 = vpop.f32.mrb[0].mxu0
        %v675 = vadd.f32 0.0, %v674
        %v676 = vpop.f32.mrb[0].mxu0
        %677 = vdwg.mxu0
        %v678 = vsel %vm601, %v675, -inf
        %679 = vmax.xlane.f32.xlu0 %v678
        %v680 = vpop.xlane.xlu0 %679
        %v681 = vsub.f32 %v675, %v680
        %v682 = vmul.f32 %v681, 1.442695
        %v683 = vpow.pop %v682
        %v684 = vsel %vm601, %v683, 0.0
        %685 = vadd.xlane.f32.xlu0 %v684
        %v686 = vpop.xlane.xlu0 %685
        %v687 = vrcp.pop %v686
        %v688 = vmul.f32 %v683, %v687
        %v690 = vsel %vm601, %v688, 0
        %692 = vmatprep.subr.mxu0 0.0
        %693 = vmatpush1.msra.mxu0 %v600
        %694 = vmatprep.subr.mxu0 0.0
        %695 = vmatpush1.msra.mxu0 0.0
        %696 = vmatprep.subr.mxu0 0.0
        %697 = vmatpush1.msra.mxu0 0.0
        %698 = vmatprep.subr.mxu0 0.0
        %699 = vmatpush1.msra.mxu0 0.0
        %700 = vmatprep.subr.mxu0 0.0
        %701 = vmatpush1.msra.mxu0 0.0
        %702 = vmatprep.subr.mxu0 0.0
        %703 = vmatpush1.msra.mxu0 0.0
        %704 = vmatprep.subr.mxu0 0.0
        %705 = vmatpush1.msra.mxu0 0.0
        %706 = vmatprep.subr.mxu0 0.0
        %707 = vmatpush1.msra.mxu0 0.0
        %708 = vmatprep.subr.mxu0 0.0
        %709 = vmatpush1.msra.mxu0 0.0
        %710 = vmatprep.subr.mxu0 0.0
        %711 = vmatpush1.msra.mxu0 0.0
        %712 = vmatprep.subr.mxu0 0.0
        %713 = vmatpush1.msra.mxu0 0.0
        %714 = vmatprep.subr.mxu0 0.0
        %715 = vmatpush1.msra.mxu0 0.0
        %716 = vmatprep.subr.mxu0 0.0
        %717 = vmatpush1.msra.mxu0 0.0
        %718 = vmatprep.subr.mxu0 0.0
        %719 = vmatpush1.msra.mxu0 0.0
        %720 = vmatprep.subr.mxu0 0.0
        %721 = vmatpush1.msra.mxu0 0.0
        %722 = vmatprep.subr.mxu0 0.0
        %723 = vmatpush1.msra.mxu0 0.0
        %724 = vmatprep.subr.mxu0 0.0
        %725 = vmatpush1.msra.mxu0 0.0
        %726 = vmatprep.subr.mxu0 0.0
        %727 = vmatpush1.msra.mxu0 0.0
        %728 = vmatprep.subr.mxu0 0.0
        %729 = vmatpush1.msra.mxu0 0.0
        %730 = vmatprep.subr.mxu0 0.0
        %731 = vmatpush1.msra.mxu0 0.0
        %732 = vmatprep.subr.mxu0 0.0
        %733 = vmatpush1.msra.mxu0 0.0
        %734 = vmatprep.subr.mxu0 0.0
        %735 = vmatpush1.msra.mxu0 0.0
        %736 = vmatprep.subr.mxu0 0.0
        %737 = vmatpush1.msra.mxu0 0.0
        %738 = vmatprep.subr.mxu0 0.0
        %739 = vmatpush1.msra.mxu0 0.0
        %740 = vmatprep.subr.mxu0 0.0
        %741 = vmatpush1.msra.mxu0 0.0
        %742 = vmatprep.subr.mxu0 0.0
        %743 = vmatpush1.msra.mxu0 0.0
        %744 = vmatprep.subr.mxu0 0.0
        %745 = vmatpush1.msra.mxu0 0.0
        %746 = vmatprep.subr.mxu0 0.0
        %747 = vmatpush1.msra.mxu0 0.0
        %748 = vmatprep.subr.mxu0 0.0
        %749 = vmatpush1.msra.mxu0 0.0
        %750 = vmatprep.subr.mxu0 0.0
        %751 = vmatpush1.msra.mxu0 0.0
        %752 = vmatprep.subr.mxu0 0.0
        %753 = vmatpush1.msra.mxu0 0.0
        %754 = vmatprep.subr.mxu0 0.0
        %755 = vmatpush1.msra.mxu0 0.0
        %756 = vmatprep.mubr.f32.mxu0 0.0
        %757 = vmatmul.mubr.f32.gmra.mrb[0].mxu0 %v690
        %v758 = vpop.f32.mrb[0].mxu0
        %v759 = vadd.f32 0.0, %v758
        %v760 = vpop.f32.mrb[0].mxu0
        %761 = vdwg.mxu0
        %v762 = vld [vmem:[#allocation5] sm:$0xff]
        %v763 = vld [vmem:[#allocation14] sm:$0xff]
        %v765 = vsel %vm601, %v759, 0
        %767 = vmatprep.subr.mxu0 0.0
        %768 = vmatpush1.msra.mxu0 %v763
        %769 = vmatprep.subr.mxu0 0.0
        %770 = vmatpush1.msra.mxu0 0.0
        %771 = vmatprep.subr.mxu0 0.0
        %772 = vmatpush1.msra.mxu0 0.0
        %773 = vmatprep.subr.mxu0 0.0
        %774 = vmatpush1.msra.mxu0 0.0
        %775 = vmatprep.subr.mxu0 0.0
        %776 = vmatpush1.msra.mxu0 0.0
        %777 = vmatprep.subr.mxu0 0.0
        %778 = vmatpush1.msra.mxu0 0.0
        %779 = vmatprep.subr.mxu0 0.0
        %780 = vmatpush1.msra.mxu0 0.0
        %781 = vmatprep.subr.mxu0 0.0
        %782 = vmatpush1.msra.mxu0 0.0
        %783 = vmatprep.subr.mxu0 0.0
        %784 = vmatpush1.msra.mxu0 0.0
        %785 = vmatprep.subr.mxu0 0.0
        %786 = vmatpush1.msra.mxu0 0.0
        %787 = vmatprep.subr.mxu0 0.0
        %788 = vmatpush1.msra.mxu0 0.0
        %789 = vmatprep.subr.mxu0 0.0
        %790 = vmatpush1.msra.mxu0 0.0
        %791 = vmatprep.subr.mxu0 0.0
        %792 = vmatpush1.msra.mxu0 0.0
        %793 = vmatprep.subr.mxu0 0.0
        %794 = vmatpush1.msra.mxu0 0.0
        %795 = vmatprep.subr.mxu0 0.0
        %796 = vmatpush1.msra.mxu0 0.0
        %797 = vmatprep.subr.mxu0 0.0
        %798 = vmatpush1.msra.mxu0 0.0
        %799 = vmatprep.subr.mxu0 0.0
        %800 = vmatpush1.msra.mxu0 0.0
        %801 = vmatprep.subr.mxu0 0.0
        %802 = vmatpush1.msra.mxu0 0.0
        %803 = vmatprep.subr.mxu0 0.0
        %804 = vmatpush1.msra.mxu0 0.0
        %805 = vmatprep.subr.mxu0 0.0
        %806 = vmatpush1.msra.mxu0 0.0
        %807 = vmatprep.subr.mxu0 0.0
        %808 = vmatpush1.msra.mxu0 0.0
        %809 = vmatprep.subr.mxu0 0.0
        %810 = vmatpush1.msra.mxu0 0.0
        %811 = vmatprep.subr.mxu0 0.0
        %812 = vmatpush1.msra.mxu0 0.0
        %813 = vmatprep.subr.mxu0 0.0
        %814 = vmatpush1.msra.mxu0 0.0
        %815 = vmatprep.subr.mxu0 0.0
        %816 = vmatpush1.msra.mxu0 0.0
        %817 = vmatprep.subr.mxu0 0.0
        %818 = vmatpush1.msra.mxu0 0.0
        %819 = vmatprep.subr.mxu0 0.0
        %820 = vmatpush1.msra.mxu0 0.0
        %821 = vmatprep.subr.mxu0 0.0
        %822 = vmatpush1.msra.mxu0 0.0
        %823 = vmatprep.subr.mxu0 0.0
        %824 = vmatpush1.msra.mxu0 0.0
        %825 = vmatprep.subr.mxu0 0.0
        %826 = vmatpush1.msra.mxu0 0.0
        %827 = vmatprep.subr.mxu0 0.0
        %828 = vmatpush1.msra.mxu0 0.0
        %829 = vmatprep.subr.mxu0 0.0
        %830 = vmatpush1.msra.mxu0 0.0
        %831 = vmatprep.mubr.f32.mxu0 0.0
        %832 = vmatmul.mubr.f32.gmra.mrb[0].mxu0 %v765
        %v833 = vpop.f32.mrb[0].mxu0
        %v834 = vadd.f32 0.0, %v833
        %v835 = vpop.f32.mrb[0].mxu0
        %836 = vdwg.mxu0
        %v837 = vadd.f32 %v762, %v834
        %838 = vst.msk [vmem:[#allocation5] sm:$0xff] %vm362, %v837
        %v839 = vld [vmem:[#allocation2] sm:$0xff]
        %v840 = vld [vmem:[#allocation3] sm:$0xff]
        %v841 = vld [vmem:[#allocation4] sm:$0xff]
        %843 = vrot.lane.b32.xlu0 %v839, 120
        %v844 = vpop.permute.xlu0 %843
        %846 = vrot.lane.b32.xlu0 %v840, 120
        %v847 = vpop.permute.xlu0 %846
        %v848 = vsel %vm601, %v844, 0
        %v850 = vsel %vm601, %v847, 0
        %852 = vmatprep.subr.mxu0 0.0
        %853 = vmatpush1.xpose.msra.mxu0 %v850
        %854 = vmatprep.subr.mxu0 0.0
        %855 = vmatpush1.xpose.msra.mxu0 0.0
        %856 = vmatprep.subr.mxu0 0.0
        %857 = vmatpush1.xpose.msra.mxu0 0.0
        %858 = vmatprep.subr.mxu0 0.0
        %859 = vmatpush1.xpose.msra.mxu0 0.0
        %860 = vmatprep.subr.mxu0 0.0
        %861 = vmatpush1.xpose.msra.mxu0 0.0
        %862 = vmatprep.subr.mxu0 0.0
        %863 = vmatpush1.xpose.msra.mxu0 0.0
        %864 = vmatprep.subr.mxu0 0.0
        %865 = vmatpush1.xpose.msra.mxu0 0.0
        %866 = vmatprep.subr.mxu0 0.0
        %867 = vmatpush1.xpose.msra.mxu0 0.0
        %868 = vmatprep.subr.mxu0 0.0
        %869 = vmatpush1.xpose.msra.mxu0 0.0
        %870 = vmatprep.subr.mxu0 0.0
        %871 = vmatpush1.xpose.msra.mxu0 0.0
        %872 = vmatprep.subr.mxu0 0.0
        %873 = vmatpush1.xpose.msra.mxu0 0.0
        %874 = vmatprep.subr.mxu0 0.0
        %875 = vmatpush1.xpose.msra.mxu0 0.0
        %876 = vmatprep.subr.mxu0 0.0
        %877 = vmatpush1.xpose.msra.mxu0 0.0
        %878 = vmatprep.subr.mxu0 0.0
        %879 = vmatpush1.xpose.msra.mxu0 0.0
        %880 = vmatprep.subr.mxu0 0.0
        %881 = vmatpush1.xpose.msra.mxu0 0.0
        %882 = vmatprep.subr.mxu0 0.0
        %883 = vmatpush1.xpose.msra.mxu0 0.0
        %884 = vmatprep.subr.mxu0 0.0
        %885 = vmatpush1.xpose.msra.mxu0 0.0
        %886 = vmatprep.subr.mxu0 0.0
        %887 = vmatpush1.xpose.msra.mxu0 0.0
        %888 = vmatprep.subr.mxu0 0.0
        %889 = vmatpush1.xpose.msra.mxu0 0.0
        %890 = vmatprep.subr.mxu0 0.0
        %891 = vmatpush1.xpose.msra.mxu0 0.0
        %892 = vmatprep.subr.mxu0 0.0
        %893 = vmatpush1.xpose.msra.mxu0 0.0
        %894 = vmatprep.subr.mxu0 0.0
        %895 = vmatpush1.xpose.msra.mxu0 0.0
        %896 = vmatprep.subr.mxu0 0.0
        %897 = vmatpush1.xpose.msra.mxu0 0.0
        %898 = vmatprep.subr.mxu0 0.0
        %899 = vmatpush1.xpose.msra.mxu0 0.0
        %900 = vmatprep.subr.mxu0 0.0
        %901 = vmatpush1.xpose.msra.mxu0 0.0
        %902 = vmatprep.subr.mxu0 0.0
        %903 = vmatpush1.xpose.msra.mxu0 0.0
        %904 = vmatprep.subr.mxu0 0.0
        %905 = vmatpush1.xpose.msra.mxu0 0.0
        %906 = vmatprep.subr.mxu0 0.0
        %907 = vmatpush1.xpose.msra.mxu0 0.0
        %908 = vmatprep.subr.mxu0 0.0
        %909 = vmatpush1.xpose.msra.mxu0 0.0
        %910 = vmatprep.subr.mxu0 0.0
        %911 = vmatpush1.xpose.msra.mxu0 0.0
        %912 = vmatprep.subr.mxu0 0.0
        %913 = vmatpush1.xpose.msra.mxu0 0.0
        %914 = vmatprep.subr.mxu0 0.0
        %915 = vmatpush1.xpose.msra.mxu0 0.0
        %916 = vmatprep.mubr.f32.mxu0 0.0
        %917 = vmatmul.mubr.f32.gmra.mrb[0].mxu0 %v848
        %v918 = vpop.f32.mrb[0].mxu0
        %v919 = vadd.f32 0.0, %v918
        %v920 = vpop.f32.mrb[0].mxu0
        %921 = vdwg.mxu0
        %v922 = vsel %vm601, %v919, -inf
        %923 = vmax.xlane.f32.xlu0 %v922
        %v924 = vpop.xlane.xlu0 %923
        %v925 = vsub.f32 %v919, %v924
        %v926 = vmul.f32 %v925, 1.442695
        %v927 = vpow.pop %v926
        %v928 = vsel %vm601, %v927, 0.0
        %929 = vadd.xlane.f32.xlu0 %v928
        %v930 = vpop.xlane.xlu0 %929
        %v931 = vrcp.pop %v930
        %v932 = vmul.f32 %v927, %v931
        %934 = vrot.lane.b32.xlu0 %v841, 120
        %v935 = vpop.permute.xlu0 %934
        %v938 = vsel %vm601, %v932, 0
        %940 = vmatprep.subr.mxu0 0.0
        %941 = vmatpush1.msra.mxu0 %v935
        %942 = vmatprep.subr.mxu0 0.0
        %943 = vmatpush1.msra.mxu0 0.0
        %944 = vmatprep.subr.mxu0 0.0
        %945 = vmatpush1.msra.mxu0 0.0
        %946 = vmatprep.subr.mxu0 0.0
        %947 = vmatpush1.msra.mxu0 0.0
        %948 = vmatprep.subr.mxu0 0.0
        %949 = vmatpush1.msra.mxu0 0.0
        %950 = vmatprep.subr.mxu0 0.0
        %951 = vmatpush1.msra.mxu0 0.0
        %952 = vmatprep.subr.mxu0 0.0
        %953 = vmatpush1.msra.mxu0 0.0
        %954 = vmatprep.subr.mxu0 0.0
        %955 = vmatpush1.msra.mxu0 0.0
        %956 = vmatprep.subr.mxu0 0.0
        %957 = vmatpush1.msra.mxu0 0.0
        %958 = vmatprep.subr.mxu0 0.0
        %959 = vmatpush1.msra.mxu0 0.0
        %960 = vmatprep.subr.mxu0 0.0
        %961 = vmatpush1.msra.mxu0 0.0
        %962 = vmatprep.subr.mxu0 0.0
        %963 = vmatpush1.msra.mxu0 0.0
        %964 = vmatprep.subr.mxu0 0.0
        %965 = vmatpush1.msra.mxu0 0.0
        %966 = vmatprep.subr.mxu0 0.0
        %967 = vmatpush1.msra.mxu0 0.0
        %968 = vmatprep.subr.mxu0 0.0
        %969 = vmatpush1.msra.mxu0 0.0
        %970 = vmatprep.subr.mxu0 0.0
        %971 = vmatpush1.msra.mxu0 0.0
        %972 = vmatprep.subr.mxu0 0.0
        %973 = vmatpush1.msra.mxu0 0.0
        %974 = vmatprep.subr.mxu0 0.0
        %975 = vmatpush1.msra.mxu0 0.0
        %976 = vmatprep.subr.mxu0 0.0
        %977 = vmatpush1.msra.mxu0 0.0
        %978 = vmatprep.subr.mxu0 0.0
        %979 = vmatpush1.msra.mxu0 0.0
        %980 = vmatprep.subr.mxu0 0.0
        %981 = vmatpush1.msra.mxu0 0.0
        %982 = vmatprep.subr.mxu0 0.0
        %983 = vmatpush1.msra.mxu0 0.0
        %984 = vmatprep.subr.mxu0 0.0
        %985 = vmatpush1.msra.mxu0 0.0
        %986 = vmatprep.subr.mxu0 0.0
        %987 = vmatpush1.msra.mxu0 0.0
        %988 = vmatprep.subr.mxu0 0.0
        %989 = vmatpush1.msra.mxu0 0.0
        %990 = vmatprep.subr.mxu0 0.0
        %991 = vmatpush1.msra.mxu0 0.0
        %992 = vmatprep.subr.mxu0 0.0
        %993 = vmatpush1.msra.mxu0 0.0
        %994 = vmatprep.subr.mxu0 0.0
        %995 = vmatpush1.msra.mxu0 0.0
        %996 = vmatprep.subr.mxu0 0.0
        %997 = vmatpush1.msra.mxu0 0.0
        %998 = vmatprep.subr.mxu0 0.0
        %999 = vmatpush1.msra.mxu0 0.0
        %1000 = vmatprep.subr.mxu0 0.0
        %1001 = vmatpush1.msra.mxu0 0.0
        %1002 = vmatprep.subr.mxu0 0.0
        %1003 = vmatpush1.msra.mxu0 0.0
        %1004 = vmatprep.mubr.f32.mxu0 0.0
        %1005 = vmatmul.mubr.f32.gmra.mrb[0].mxu0 %v938
        %v1006 = vpop.f32.mrb[0].mxu0
        %v1007 = vadd.f32 0.0, %v1006
        %v1008 = vpop.f32.mrb[0].mxu0
        %1009 = vdwg.mxu0
        %v1010 = vld [vmem:[#allocation5] sm:$0xff]
        %v1011 = vld [vmem:[#allocation14 + $0x8] sm:$0xff]
        %v1013 = vsel %vm601, %v1007, 0
        %1015 = vmatprep.subr.mxu0 0.0
        %1016 = vmatpush1.msra.mxu0 %v1011
        %1017 = vmatprep.subr.mxu0 0.0
        %1018 = vmatpush1.msra.mxu0 0.0
        %1019 = vmatprep.subr.mxu0 0.0
        %1020 = vmatpush1.msra.mxu0 0.0
        %1021 = vmatprep.subr.mxu0 0.0
        %1022 = vmatpush1.msra.mxu0 0.0
        %1023 = vmatprep.subr.mxu0 0.0
        %1024 = vmatpush1.msra.mxu0 0.0
        %1025 = vmatprep.subr.mxu0 0.0
        %1026 = vmatpush1.msra.mxu0 0.0
        %1027 = vmatprep.subr.mxu0 0.0
        %1028 = vmatpush1.msra.mxu0 0.0
        %1029 = vmatprep.subr.mxu0 0.0
        %1030 = vmatpush1.msra.mxu0 0.0
        %1031 = vmatprep.subr.mxu0 0.0
        %1032 = vmatpush1.msra.mxu0 0.0
        %1033 = vmatprep.subr.mxu0 0.0
        %1034 = vmatpush1.msra.mxu0 0.0
        %1035 = vmatprep.subr.mxu0 0.0
        %1036 = vmatpush1.msra.mxu0 0.0
        %1037 = vmatprep.subr.mxu0 0.0
        %1038 = vmatpush1.msra.mxu0 0.0
        %1039 = vmatprep.subr.mxu0 0.0
        %1040 = vmatpush1.msra.mxu0 0.0
        %1041 = vmatprep.subr.mxu0 0.0
        %1042 = vmatpush1.msra.mxu0 0.0
        %1043 = vmatprep.subr.mxu0 0.0
        %1044 = vmatpush1.msra.mxu0 0.0
        %1045 = vmatprep.subr.mxu0 0.0
        %1046 = vmatpush1.msra.mxu0 0.0
        %1047 = vmatprep.subr.mxu0 0.0
        %1048 = vmatpush1.msra.mxu0 0.0
        %1049 = vmatprep.subr.mxu0 0.0
        %1050 = vmatpush1.msra.mxu0 0.0
        %1051 = vmatprep.subr.mxu0 0.0
        %1052 = vmatpush1.msra.mxu0 0.0
        %1053 = vmatprep.subr.mxu0 0.0
        %1054 = vmatpush1.msra.mxu0 0.0
        %1055 = vmatprep.subr.mxu0 0.0
        %1056 = vmatpush1.msra.mxu0 0.0
        %1057 = vmatprep.subr.mxu0 0.0
        %1058 = vmatpush1.msra.mxu0 0.0
        %1059 = vmatprep.subr.mxu0 0.0
        %1060 = vmatpush1.msra.mxu0 0.0
        %1061 = vmatprep.subr.mxu0 0.0
        %1062 = vmatpush1.msra.mxu0 0.0
        %1063 = vmatprep.subr.mxu0 0.0
        %1064 = vmatpush1.msra.mxu0 0.0
        %1065 = vmatprep.subr.mxu0 0.0
        %1066 = vmatpush1.msra.mxu0 0.0
        %1067 = vmatprep.subr.mxu0 0.0
        %1068 = vmatpush1.msra.mxu0 0.0
        %1069 = vmatprep.subr.mxu0 0.0
        %1070 = vmatpush1.msra.mxu0 0.0
        %1071 = vmatprep.subr.mxu0 0.0
        %1072 = vmatpush1.msra.mxu0 0.0
        %1073 = vmatprep.subr.mxu0 0.0
        %1074 = vmatpush1.msra.mxu0 0.0
        %1075 = vmatprep.subr.mxu0 0.0
        %1076 = vmatpush1.msra.mxu0 0.0
        %1077 = vmatprep.subr.mxu0 0.0
        %1078 = vmatpush1.msra.mxu0 0.0
        %1079 = vmatprep.mubr.f32.mxu0 0.0
        %1080 = vmatmul.mubr.f32.gmra.mrb[0].mxu0 %v1013
        %v1081 = vpop.f32.mrb[0].mxu0
        %v1082 = vadd.f32 0.0, %v1081
        %v1083 = vpop.f32.mrb[0].mxu0
        %1084 = vdwg.mxu0
        %v1085 = vadd.f32 %v1010, %v1082
        %1086 = vst.msk [vmem:[#allocation5] sm:$0xff] %vm362, %v1085
        %v1087 = vld [vmem:[#allocation2] sm:$0xff]
        %v1088 = vld [vmem:[#allocation3] sm:$0xff]
        %v1089 = vld [vmem:[#allocation4] sm:$0xff]
        %1091 = vrot.lane.b32.xlu0 %v1087, 112
        %v1092 = vpop.permute.xlu0 %1091
        %1094 = vrot.lane.b32.xlu0 %v1088, 112
        %v1095 = vpop.permute.xlu0 %1094
        %v1096 = vsel %vm601, %v1092, 0
        %v1098 = vsel %vm601, %v1095, 0
        %1100 = vmatprep.subr.mxu0 0.0
        %1101 = vmatpush1.xpose.msra.mxu0 %v1098
        %1102 = vmatprep.subr.mxu0 0.0
        %1103 = vmatpush1.xpose.msra.mxu0 0.0
        %1104 = vmatprep.subr.mxu0 0.0
        %1105 = vmatpush1.xpose.msra.mxu0 0.0
        %1106 = vmatprep.subr.mxu0 0.0
        %1107 = vmatpush1.xpose.msra.mxu0 0.0
        %1108 = vmatprep.subr.mxu0 0.0
        %1109 = vmatpush1.xpose.msra.mxu0 0.0
        %1110 = vmatprep.subr.mxu0 0.0
        %1111 = vmatpush1.xpose.msra.mxu0 0.0
        %1112 = vmatprep.subr.mxu0 0.0
        %1113 = vmatpush1.xpose.msra.mxu0 0.0
        %1114 = vmatprep.subr.mxu0 0.0
        %1115 = vmatpush1.xpose.msra.mxu0 0.0
        %1116 = vmatprep.subr.mxu0 0.0
        %1117 = vmatpush1.xpose.msra.mxu0 0.0
        %1118 = vmatprep.subr.mxu0 0.0
        %1119 = vmatpush1.xpose.msra.mxu0 0.0
        %1120 = vmatprep.subr.mxu0 0.0
        %1121 = vmatpush1.xpose.msra.mxu0 0.0
        %1122 = vmatprep.subr.mxu0 0.0
        %1123 = vmatpush1.xpose.msra.mxu0 0.0
        %1124 = vmatprep.subr.mxu0 0.0
        %1125 = vmatpush1.xpose.msra.mxu0 0.0
        %1126 = vmatprep.subr.mxu0 0.0
        %1127 = vmatpush1.xpose.msra.mxu0 0.0
        %1128 = vmatprep.subr.mxu0 0.0
        %1129 = vmatpush1.xpose.msra.mxu0 0.0
        %1130 = vmatprep.subr.mxu0 0.0
        %1131 = vmatpush1.xpose.msra.mxu0 0.0
        %1132 = vmatprep.subr.mxu0 0.0
        %1133 = vmatpush1.xpose.msra.mxu0 0.0
        %1134 = vmatprep.subr.mxu0 0.0
        %1135 = vmatpush1.xpose.msra.mxu0 0.0
        %1136 = vmatprep.subr.mxu0 0.0
        %1137 = vmatpush1.xpose.msra.mxu0 0.0
        %1138 = vmatprep.subr.mxu0 0.0
        %1139 = vmatpush1.xpose.msra.mxu0 0.0
        %1140 = vmatprep.subr.mxu0 0.0
        %1141 = vmatpush1.xpose.msra.mxu0 0.0
        %1142 = vmatprep.subr.mxu0 0.0
        %1143 = vmatpush1.xpose.msra.mxu0 0.0
        %1144 = vmatprep.subr.mxu0 0.0
        %1145 = vmatpush1.xpose.msra.mxu0 0.0
        %1146 = vmatprep.subr.mxu0 0.0
        %1147 = vmatpush1.xpose.msra.mxu0 0.0
        %1148 = vmatprep.subr.mxu0 0.0
        %1149 = vmatpush1.xpose.msra.mxu0 0.0
        %1150 = vmatprep.subr.mxu0 0.0
        %1151 = vmatpush1.xpose.msra.mxu0 0.0
        %1152 = vmatprep.subr.mxu0 0.0
        %1153 = vmatpush1.xpose.msra.mxu0 0.0
        %1154 = vmatprep.subr.mxu0 0.0
        %1155 = vmatpush1.xpose.msra.mxu0 0.0
        %1156 = vmatprep.subr.mxu0 0.0
        %1157 = vmatpush1.xpose.msra.mxu0 0.0
        %1158 = vmatprep.subr.mxu0 0.0
        %1159 = vmatpush1.xpose.msra.mxu0 0.0
        %1160 = vmatprep.subr.mxu0 0.0
        %1161 = vmatpush1.xpose.msra.mxu0 0.0
        %1162 = vmatprep.subr.mxu0 0.0
        %1163 = vmatpush1.xpose.msra.mxu0 0.0
        %1164 = vmatprep.mubr.f32.mxu0 0.0
        %1165 = vmatmul.mubr.f32.gmra.mrb[0].mxu0 %v1096
        %v1166 = vpop.f32.mrb[0].mxu0
        %v1167 = vadd.f32 0.0, %v1166
        %v1168 = vpop.f32.mrb[0].mxu0
        %1169 = vdwg.mxu0
        %v1170 = vsel %vm601, %v1167, -inf
        %1171 = vmax.xlane.f32.xlu0 %v1170
        %v1172 = vpop.xlane.xlu0 %1171
        %v1173 = vsub.f32 %v1167, %v1172
        %v1174 = vmul.f32 %v1173, 1.442695
        %v1175 = vpow.pop %v1174
        %v1176 = vsel %vm601, %v1175, 0.0
        %1177 = vadd.xlane.f32.xlu0 %v1176
        %v1178 = vpop.xlane.xlu0 %1177
        %v1179 = vrcp.pop %v1178
        %v1180 = vmul.f32 %v1175, %v1179
        %1182 = vrot.lane.b32.xlu0 %v1089, 112
        %v1183 = vpop.permute.xlu0 %1182
        %v1186 = vsel %vm601, %v1180, 0
        %1188 = vmatprep.subr.mxu0 0.0
        %1189 = vmatpush1.msra.mxu0 %v1183
        %1190 = vmatprep.subr.mxu0 0.0
        %1191 = vmatpush1.msra.mxu0 0.0
        %1192 = vmatprep.subr.mxu0 0.0
        %1193 = vmatpush1.msra.mxu0 0.0
        %1194 = vmatprep.subr.mxu0 0.0
        %1195 = vmatpush1.msra.mxu0 0.0
        %1196 = vmatprep.subr.mxu0 0.0
        %1197 = vmatpush1.msra.mxu0 0.0
        %1198 = vmatprep.subr.mxu0 0.0
        %1199 = vmatpush1.msra.mxu0 0.0
        %1200 = vmatprep.subr.mxu0 0.0
        %1201 = vmatpush1.msra.mxu0 0.0
        %1202 = vmatprep.subr.mxu0 0.0
        %1203 = vmatpush1.msra.mxu0 0.0
        %1204 = vmatprep.subr.mxu0 0.0
        %1205 = vmatpush1.msra.mxu0 0.0
        %1206 = vmatprep.subr.mxu0 0.0
        %1207 = vmatpush1.msra.mxu0 0.0
        %1208 = vmatprep.subr.mxu0 0.0
        %1209 = vmatpush1.msra.mxu0 0.0
        %1210 = vmatprep.subr.mxu0 0.0
        %1211 = vmatpush1.msra.mxu0 0.0
        %1212 = vmatprep.subr.mxu0 0.0
        %1213 = vmatpush1.msra.mxu0 0.0
        %1214 = vmatprep.subr.mxu0 0.0
        %1215 = vmatpush1.msra.mxu0 0.0
        %1216 = vmatprep.subr.mxu0 0.0
        %1217 = vmatpush1.msra.mxu0 0.0
        %1218 = vmatprep.subr.mxu0 0.0
        %1219 = vmatpush1.msra.mxu0 0.0
        %1220 = vmatprep.subr.mxu0 0.0
        %1221 = vmatpush1.msra.mxu0 0.0
        %1222 = vmatprep.subr.mxu0 0.0
        %1223 = vmatpush1.msra.mxu0 0.0
        %1224 = vmatprep.subr.mxu0 0.0
        %1225 = vmatpush1.msra.mxu0 0.0
        %1226 = vmatprep.subr.mxu0 0.0
        %1227 = vmatpush1.msra.mxu0 0.0
        %1228 = vmatprep.subr.mxu0 0.0
        %1229 = vmatpush1.msra.mxu0 0.0
        %1230 = vmatprep.subr.mxu0 0.0
        %1231 = vmatpush1.msra.mxu0 0.0
        %1232 = vmatprep.subr.mxu0 0.0
        %1233 = vmatpush1.msra.mxu0 0.0
        %1234 = vmatprep.subr.mxu0 0.0
        %1235 = vmatpush1.msra.mxu0 0.0
        %1236 = vmatprep.subr.mxu0 0.0
        %1237 = vmatpush1.msra.mxu0 0.0
        %1238 = vmatprep.subr.mxu0 0.0
        %1239 = vmatpush1.msra.mxu0 0.0
        %1240 = vmatprep.subr.mxu0 0.0
        %1241 = vmatpush1.msra.mxu0 0.0
        %1242 = vmatprep.subr.mxu0 0.0
        %1243 = vmatpush1.msra.mxu0 0.0
        %1244 = vmatprep.subr.mxu0 0.0
        %1245 = vmatpush1.msra.mxu0 0.0
        %1246 = vmatprep.subr.mxu0 0.0
        %1247 = vmatpush1.msra.mxu0 0.0
        %1248 = vmatprep.subr.mxu0 0.0
        %1249 = vmatpush1.msra.mxu0 0.0
        %1250 = vmatprep.subr.mxu0 0.0
        %1251 = vmatpush1.msra.mxu0 0.0
        %1252 = vmatprep.mubr.f32.mxu0 0.0
        %1253 = vmatmul.mubr.f32.gmra.mrb[0].mxu0 %v1186
        %v1254 = vpop.f32.mrb[0].mxu0
        %v1255 = vadd.f32 0.0, %v1254
        %v1256 = vpop.f32.mrb[0].mxu0
        %1257 = vdwg.mxu0
        %v1258 = vld [vmem:[#allocation5] sm:$0xff]
        %v1259 = vld [vmem:[#allocation14 + $0x10] sm:$0xff]
        %v1261 = vsel %vm601, %v1255, 0
        %1263 = vmatprep.subr.mxu0 0.0
        %1264 = vmatpush1.msra.mxu0 %v1259
        %1265 = vmatprep.subr.mxu0 0.0
        %1266 = vmatpush1.msra.mxu0 0.0
        %1267 = vmatprep.subr.mxu0 0.0
        %1268 = vmatpush1.msra.mxu0 0.0
        %1269 = vmatprep.subr.mxu0 0.0
        %1270 = vmatpush1.msra.mxu0 0.0
        %1271 = vmatprep.subr.mxu0 0.0
        %1272 = vmatpush1.msra.mxu0 0.0
        %1273 = vmatprep.subr.mxu0 0.0
        %1274 = vmatpush1.msra.mxu0 0.0
        %1275 = vmatprep.subr.mxu0 0.0
        %1276 = vmatpush1.msra.mxu0 0.0
        %1277 = vmatprep.subr.mxu0 0.0
        %1278 = vmatpush1.msra.mxu0 0.0
        %1279 = vmatprep.subr.mxu0 0.0
        %1280 = vmatpush1.msra.mxu0 0.0
        %1281 = vmatprep.subr.mxu0 0.0
        %1282 = vmatpush1.msra.mxu0 0.0
        %1283 = vmatprep.subr.mxu0 0.0
        %1284 = vmatpush1.msra.mxu0 0.0
        %1285 = vmatprep.subr.mxu0 0.0
        %1286 = vmatpush1.msra.mxu0 0.0
        %1287 = vmatprep.subr.mxu0 0.0
        %1288 = vmatpush1.msra.mxu0 0.0
        %1289 = vmatprep.subr.mxu0 0.0
        %1290 = vmatpush1.msra.mxu0 0.0
        %1291 = vmatprep.subr.mxu0 0.0
        %1292 = vmatpush1.msra.mxu0 0.0
        %1293 = vmatprep.subr.mxu0 0.0
        %1294 = vmatpush1.msra.mxu0 0.0
        %1295 = vmatprep.subr.mxu0 0.0
        %1296 = vmatpush1.msra.mxu0 0.0
        %1297 = vmatprep.subr.mxu0 0.0
        %1298 = vmatpush1.msra.mxu0 0.0
        %1299 = vmatprep.subr.mxu0 0.0
        %1300 = vmatpush1.msra.mxu0 0.0
        %1301 = vmatprep.subr.mxu0 0.0
        %1302 = vmatpush1.msra.mxu0 0.0
        %1303 = vmatprep.subr.mxu0 0.0
        %1304 = vmatpush1.msra.mxu0 0.0
        %1305 = vmatprep.subr.mxu0 0.0
        %1306 = vmatpush1.msra.mxu0 0.0
        %1307 = vmatprep.subr.mxu0 0.0
        %1308 = vmatpush1.msra.mxu0 0.0
        %1309 = vmatprep.subr.mxu0 0.0
        %1310 = vmatpush1.msra.mxu0 0.0
        %1311 = vmatprep.subr.mxu0 0.0
        %1312 = vmatpush1.msra.mxu0 0.0
        %1313 = vmatprep.subr.mxu0 0.0
        %1314 = vmatpush1.msra.mxu0 0.0
        %1315 = vmatprep.subr.mxu0 0.0
        %1316 = vmatpush1.msra.mxu0 0.0
        %1317 = vmatprep.subr.mxu0 0.0
        %1318 = vmatpush1.msra.mxu0 0.0
        %1319 = vmatprep.subr.mxu0 0.0
        %1320 = vmatpush1.msra.mxu0 0.0
        %1321 = vmatprep.subr.mxu0 0.0
        %1322 = vmatpush1.msra.mxu0 0.0
        %1323 = vmatprep.subr.mxu0 0.0
        %1324 = vmatpush1.msra.mxu0 0.0
        %1325 = vmatprep.subr.mxu0 0.0
        %1326 = vmatpush1.msra.mxu0 0.0
        %1327 = vmatprep.mubr.f32.mxu0 0.0
        %1328 = vmatmul.mubr.f32.gmra.mrb[0].mxu0 %v1261
        %v1329 = vpop.f32.mrb[0].mxu0
        %v1330 = vadd.f32 0.0, %v1329
        %v1331 = vpop.f32.mrb[0].mxu0
        %1332 = vdwg.mxu0
        %v1333 = vadd.f32 %v1258, %v1330
        %1334 = vst.msk [vmem:[#allocation5] sm:$0xff] %vm362, %v1333
        %v1335 = vld [vmem:[#allocation2] sm:$0xff]
        %v1336 = vld [vmem:[#allocation3] sm:$0xff]
        %v1337 = vld [vmem:[#allocation4] sm:$0xff]
        %1339 = vrot.lane.b32.xlu0 %v1335, 104
        %v1340 = vpop.permute.xlu0 %1339
        %1342 = vrot.lane.b32.xlu0 %v1336, 104
        %v1343 = vpop.permute.xlu0 %1342
        %v1344 = vsel %vm601, %v1340, 0
        %v1346 = vsel %vm601, %v1343, 0
        %1348 = vmatprep.subr.mxu0 0.0
        %1349 = vmatpush1.xpose.msra.mxu0 %v1346
        %1350 = vmatprep.subr.mxu0 0.0
        %1351 = vmatpush1.xpose.msra.mxu0 0.0
        %1352 = vmatprep.subr.mxu0 0.0
        %1353 = vmatpush1.xpose.msra.mxu0 0.0
        %1354 = vmatprep.subr.mxu0 0.0
        %1355 = vmatpush1.xpose.msra.mxu0 0.0
        %1356 = vmatprep.subr.mxu0 0.0
        %1357 = vmatpush1.xpose.msra.mxu0 0.0
        %1358 = vmatprep.subr.mxu0 0.0
        %1359 = vmatpush1.xpose.msra.mxu0 0.0
        %1360 = vmatprep.subr.mxu0 0.0
        %1361 = vmatpush1.xpose.msra.mxu0 0.0
        %1362 = vmatprep.subr.mxu0 0.0
        %1363 = vmatpush1.xpose.msra.mxu0 0.0
        %1364 = vmatprep.subr.mxu0 0.0
        %1365 = vmatpush1.xpose.msra.mxu0 0.0
        %1366 = vmatprep.subr.mxu0 0.0
        %1367 = vmatpush1.xpose.msra.mxu0 0.0
        %1368 = vmatprep.subr.mxu0 0.0
        %1369 = vmatpush1.xpose.msra.mxu0 0.0
        %1370 = vmatprep.subr.mxu0 0.0
        %1371 = vmatpush1.xpose.msra.mxu0 0.0
        %1372 = vmatprep.subr.mxu0 0.0
        %1373 = vmatpush1.xpose.msra.mxu0 0.0
        %1374 = vmatprep.subr.mxu0 0.0
        %1375 = vmatpush1.xpose.msra.mxu0 0.0
        %1376 = vmatprep.subr.mxu0 0.0
        %1377 = vmatpush1.xpose.msra.mxu0 0.0
        %1378 = vmatprep.subr.mxu0 0.0
        %1379 = vmatpush1.xpose.msra.mxu0 0.0
        %1380 = vmatprep.subr.mxu0 0.0
        %1381 = vmatpush1.xpose.msra.mxu0 0.0
        %1382 = vmatprep.subr.mxu0 0.0
        %1383 = vmatpush1.xpose.msra.mxu0 0.0
        %1384 = vmatprep.subr.mxu0 0.0
        %1385 = vmatpush1.xpose.msra.mxu0 0.0
        %1386 = vmatprep.subr.mxu0 0.0
        %1387 = vmatpush1.xpose.msra.mxu0 0.0
        %1388 = vmatprep.subr.mxu0 0.0
        %1389 = vmatpush1.xpose.msra.mxu0 0.0
        %1390 = vmatprep.subr.mxu0 0.0
        %1391 = vmatpush1.xpose.msra.mxu0 0.0
        %1392 = vmatprep.subr.mxu0 0.0
        %1393 = vmatpush1.xpose.msra.mxu0 0.0
        %1394 = vmatprep.subr.mxu0 0.0
        %1395 = vmatpush1.xpose.msra.mxu0 0.0
        %1396 = vmatprep.subr.mxu0 0.0
        %1397 = vmatpush1.xpose.msra.mxu0 0.0
        %1398 = vmatprep.subr.mxu0 0.0
        %1399 = vmatpush1.xpose.msra.mxu0 0.0
        %1400 = vmatprep.subr.mxu0 0.0
        %1401 = vmatpush1.xpose.msra.mxu0 0.0
        %1402 = vmatprep.subr.mxu0 0.0
        %1403 = vmatpush1.xpose.msra.mxu0 0.0
        %1404 = vmatprep.subr.mxu0 0.0
        %1405 = vmatpush1.xpose.msra.mxu0 0.0
        %1406 = vmatprep.subr.mxu0 0.0
        %1407 = vmatpush1.xpose.msra.mxu0 0.0
        %1408 = vmatprep.subr.mxu0 0.0
        %1409 = vmatpush1.xpose.msra.mxu0 0.0
        %1410 = vmatprep.subr.mxu0 0.0
        %1411 = vmatpush1.xpose.msra.mxu0 0.0
        %1412 = vmatprep.mubr.f32.mxu0 0.0
        %1413 = vmatmul.mubr.f32.gmra.mrb[0].mxu0 %v1344
        %v1414 = vpop.f32.mrb[0].mxu0
        %v1415 = vadd.f32 0.0, %v1414
        %v1416 = vpop.f32.mrb[0].mxu0
        %1417 = vdwg.mxu0
        %v1418 = vsel %vm601, %v1415, -inf
        %1419 = vmax.xlane.f32.xlu0 %v1418
        %v1420 = vpop.xlane.xlu0 %1419
        %v1421 = vsub.f32 %v1415, %v1420
        %v1422 = vmul.f32 %v1421, 1.442695
        %v1423 = vpow.pop %v1422
        %v1424 = vsel %vm601, %v1423, 0.0
        %1425 = vadd.xlane.f32.xlu0 %v1424
        %v1426 = vpop.xlane.xlu0 %1425
        %v1427 = vrcp.pop %v1426
        %v1428 = vmul.f32 %v1423, %v1427
        %1430 = vrot.lane.b32.xlu0 %v1337, 104
        %v1431 = vpop.permute.xlu0 %1430
        %v1434 = vsel %vm601, %v1428, 0
        %1436 = vmatprep.subr.mxu0 0.0
        %1437 = vmatpush1.msra.mxu0 %v1431
        %1438 = vmatprep.subr.mxu0 0.0
        %1439 = vmatpush1.msra.mxu0 0.0
        %1440 = vmatprep.subr.mxu0 0.0
        %1441 = vmatpush1.msra.mxu0 0.0
        %1442 = vmatprep.subr.mxu0 0.0
        %1443 = vmatpush1.msra.mxu0 0.0
        %1444 = vmatprep.subr.mxu0 0.0
        %1445 = vmatpush1.msra.mxu0 0.0
        %1446 = vmatprep.subr.mxu0 0.0
        %1447 = vmatpush1.msra.mxu0 0.0
        %1448 = vmatprep.subr.mxu0 0.0
        %1449 = vmatpush1.msra.mxu0 0.0
        %1450 = vmatprep.subr.mxu0 0.0
        %1451 = vmatpush1.msra.mxu0 0.0
        %1452 = vmatprep.subr.mxu0 0.0
        %1453 = vmatpush1.msra.mxu0 0.0
        %1454 = vmatprep.subr.mxu0 0.0
        %1455 = vmatpush1.msra.mxu0 0.0
        %1456 = vmatprep.subr.mxu0 0.0
        %1457 = vmatpush1.msra.mxu0 0.0
        %1458 = vmatprep.subr.mxu0 0.0
        %1459 = vmatpush1.msra.mxu0 0.0
        %1460 = vmatprep.subr.mxu0 0.0
        %1461 = vmatpush1.msra.mxu0 0.0
        %1462 = vmatprep.subr.mxu0 0.0
        %1463 = vmatpush1.msra.mxu0 0.0
        %1464 = vmatprep.subr.mxu0 0.0
        %1465 = vmatpush1.msra.mxu0 0.0
        %1466 = vmatprep.subr.mxu0 0.0
        %1467 = vmatpush1.msra.mxu0 0.0
        %1468 = vmatprep.subr.mxu0 0.0
        %1469 = vmatpush1.msra.mxu0 0.0
        %1470 = vmatprep.subr.mxu0 0.0
        %1471 = vmatpush1.msra.mxu0 0.0
        %1472 = vmatprep.subr.mxu0 0.0
        %1473 = vmatpush1.msra.mxu0 0.0
        %1474 = vmatprep.subr.mxu0 0.0
        %1475 = vmatpush1.msra.mxu0 0.0
        %1476 = vmatprep.subr.mxu0 0.0
        %1477 = vmatpush1.msra.mxu0 0.0
        %1478 = vmatprep.subr.mxu0 0.0
        %1479 = vmatpush1.msra.mxu0 0.0
        %1480 = vmatprep.subr.mxu0 0.0
        %1481 = vmatpush1.msra.mxu0 0.0
        %1482 = vmatprep.subr.mxu0 0.0
        %1483 = vmatpush1.msra.mxu0 0.0
        %1484 = vmatprep.subr.mxu0 0.0
        %1485 = vmatpush1.msra.mxu0 0.0
        %1486 = vmatprep.subr.mxu0 0.0
        %1487 = vmatpush1.msra.mxu0 0.0
        %1488 = vmatprep.subr.mxu0 0.0
        %1489 = vmatpush1.msra.mxu0 0.0
        %1490 = vmatprep.subr.mxu0 0.0
        %1491 = vmatpush1.msra.mxu0 0.0
        %1492 = vmatprep.subr.mxu0 0.0
        %1493 = vmatpush1.msra.mxu0 0.0
        %1494 = vmatprep.subr.mxu0 0.0
        %1495 = vmatpush1.msra.mxu0 0.0
        %1496 = vmatprep.subr.mxu0 0.0
        %1497 = vmatpush1.msra.mxu0 0.0
        %1498 = vmatprep.subr.mxu0 0.0
        %1499 = vmatpush1.msra.mxu0 0.0
        %1500 = vmatprep.mubr.f32.mxu0 0.0
        %1501 = vmatmul.mubr.f32.gmra.mrb[0].mxu0 %v1434
        %v1502 = vpop.f32.mrb[0].mxu0
        %v1503 = vadd.f32 0.0, %v1502
        %v1504 = vpop.f32.mrb[0].mxu0
        %1505 = vdwg.mxu0
        %v1506 = vld [vmem:[#allocation5] sm:$0xff]
        %v1507 = vld [vmem:[#allocation14 + $0x18] sm:$0xff]
        %v1509 = vsel %vm601, %v1503, 0
        %1511 = vmatprep.subr.mxu0 0.0
        %1512 = vmatpush1.msra.mxu0 %v1507
        %1513 = vmatprep.subr.mxu0 0.0
        %1514 = vmatpush1.msra.mxu0 0.0
        %1515 = vmatprep.subr.mxu0 0.0
        %1516 = vmatpush1.msra.mxu0 0.0
        %1517 = vmatprep.subr.mxu0 0.0
        %1518 = vmatpush1.msra.mxu0 0.0
        %1519 = vmatprep.subr.mxu0 0.0
        %1520 = vmatpush1.msra.mxu0 0.0
        %1521 = vmatprep.subr.mxu0 0.0
        %1522 = vmatpush1.msra.mxu0 0.0
        %1523 = vmatprep.subr.mxu0 0.0
        %1524 = vmatpush1.msra.mxu0 0.0
        %1525 = vmatprep.subr.mxu0 0.0
        %1526 = vmatpush1.msra.mxu0 0.0
        %1527 = vmatprep.subr.mxu0 0.0
        %1528 = vmatpush1.msra.mxu0 0.0
        %1529 = vmatprep.subr.mxu0 0.0
        %1530 = vmatpush1.msra.mxu0 0.0
        %1531 = vmatprep.subr.mxu0 0.0
        %1532 = vmatpush1.msra.mxu0 0.0
        %1533 = vmatprep.subr.mxu0 0.0
        %1534 = vmatpush1.msra.mxu0 0.0
        %1535 = vmatprep.subr.mxu0 0.0
        %1536 = vmatpush1.msra.mxu0 0.0
        %1537 = vmatprep.subr.mxu0 0.0
        %1538 = vmatpush1.msra.mxu0 0.0
        %1539 = vmatprep.subr.mxu0 0.0
        %1540 = vmatpush1.msra.mxu0 0.0
        %1541 = vmatprep.subr.mxu0 0.0
        %1542 = vmatpush1.msra.mxu0 0.0
        %1543 = vmatprep.subr.mxu0 0.0
        %1544 = vmatpush1.msra.mxu0 0.0
        %1545 = vmatprep.subr.mxu0 0.0
        %1546 = vmatpush1.msra.mxu0 0.0
        %1547 = vmatprep.subr.mxu0 0.0
        %1548 = vmatpush1.msra.mxu0 0.0
        %1549 = vmatprep.subr.mxu0 0.0
        %1550 = vmatpush1.msra.mxu0 0.0
        %1551 = vmatprep.subr.mxu0 0.0
        %1552 = vmatpush1.msra.mxu0 0.0
        %1553 = vmatprep.subr.mxu0 0.0
        %1554 = vmatpush1.msra.mxu0 0.0
        %1555 = vmatprep.subr.mxu0 0.0
        %1556 = vmatpush1.msra.mxu0 0.0
        %1557 = vmatprep.subr.mxu0 0.0
        %1558 = vmatpush1.msra.mxu0 0.0
        %1559 = vmatprep.subr.mxu0 0.0
        %1560 = vmatpush1.msra.mxu0 0.0
        %1561 = vmatprep.subr.mxu0 0.0
        %1562 = vmatpush1.msra.mxu0 0.0
        %1563 = vmatprep.subr.mxu0 0.0
        %1564 = vmatpush1.msra.mxu0 0.0
        %1565 = vmatprep.subr.mxu0 0.0
        %1566 = vmatpush1.msra.mxu0 0.0
        %1567 = vmatprep.subr.mxu0 0.0
        %1568 = vmatpush1.msra.mxu0 0.0
        %1569 = vmatprep.subr.mxu0 0.0
        %1570 = vmatpush1.msra.mxu0 0.0
        %1571 = vmatprep.subr.mxu0 0.0
        %1572 = vmatpush1.msra.mxu0 0.0
        %1573 = vmatprep.subr.mxu0 0.0
        %1574 = vmatpush1.msra.mxu0 0.0
        %1575 = vmatprep.mubr.f32.mxu0 0.0
        %1576 = vmatmul.mubr.f32.gmra.mrb[0].mxu0 %v1509
        %v1577 = vpop.f32.mrb[0].mxu0
        %v1578 = vadd.f32 0.0, %v1577
        %v1579 = vpop.f32.mrb[0].mxu0
        %1580 = vdwg.mxu0
        %v1581 = vadd.f32 %v1506, %v1578
        %1582 = vst.msk [vmem:[#allocation5] sm:$0xff] %vm362, %v1581
        %v1583 = vld [vmem:[#allocation5] sm:$0xff]
        %v1584 = vld [vmem:[%s6] sm:$0x1]
        %v1586 = vlaneseq
        %v1587 = vshrl.u32 %v1586, 7
        %v1588 = vsub.s32 0, %v1587
        %v1589 = vrot.slane %v1584, %v1588
        %v1591 = vadd.f32 %v1583, %v1589
        %1592 = vst.msk [vmem:[%s351] sm:$0xff] %vm362, %v1591
        %s1593 = sand.u32 %s186, 1
        %s1594 = scalar_lea.sflag [#allocation8], %s1593
        %s1595 = sand.u32 %s186, 1
        %s1596 = smul.addr %s1595, 8
        %s1597 = scalar_lea.vmem [#allocation15], %s1596
        // Predicated region
        $region69: #{tpu_custom_call.1} parent=47 // pred_check
          %p1598 = pneg %p196
        $region70: #{tpu_custom_call.1} parent=47 // pred_check_branch
          %1600 = sbr.rel (%p1598) target = $region72
        $region71: #{tpu_custom_call.1} parent=47 // pred_region
          %s1602 = ssub.s32 128, 128
          %1603 = vsyncadd %s1594, %s1602
          %s1604 = smul.addr %s26, 128
          %s1605 = scalar_lea.hbm %s7, %s1604
          %s1607 = sshll.u32 %s1597, 4
          %s1608 = int_to_ptr.vmem [resolvable:$true] %s1607
          %1610 = dma.vmem_to_hbm [thread:$0]  %s1608, 128, %s1605, %s1594
        $region72: #{tpu_custom_call.1} parent=47 // pred_fallthru
          _
      $region48: #{tpu_custom_call.1} parent=5 // pred_fallthru
        _
      %p1611 = scmp.le.s32.totalorder 2, %s21
      // Predicated region
      $region73: #{tpu_custom_call.1} parent=5 // pred_check
        %p1612 = pneg %p1611
      $region74: #{tpu_custom_call.1} parent=5 // pred_check_branch
        %1614 = sbr.rel (%p1612) target = $region76
      $region75: #{tpu_custom_call.1} parent=5 // pred_region
        %s1615 = ssub.s32 %s21, 2
        // Predicated region
        $region77: #{tpu_custom_call.1} parent=75 // pred_check
          %p1616 = pneg %p202
        $region78: #{tpu_custom_call.1} parent=75 // pred_check_branch
          %1618 = sbr.rel (%p1616) target = $region80
        $region79: #{tpu_custom_call.1} parent=75 // pred_region
          %s1619 = sand.u32 %s187, 1
          %s1620 = scalar_lea.sflag [#allocation8], %s1619
          %s1621 = sand.u32 %s187, 1
          %s1622 = smul.addr %s1621, 8
          %s1623 = scalar_lea.vmem [#allocation15], %s1622
          %1624 = dma.done %s1620, 128
        $region80: #{tpu_custom_call.1} parent=75 // pred_fallthru
          _
      $region76: #{tpu_custom_call.1} parent=5 // pred_fallthru
        _
    $region6: #{tpu_custom_call.1} parent=1 // loop_footer
      %s25 = sadd.s32 1, %s21
    $region7: #{tpu_custom_call.1} parent=1 // loop_footer_branch
      %20 = sbr.rel target = $region3
    $region8: #{tpu_custom_call.1} parent=1 // loop_exit
      _
    %1625 = vsyncpa [#allocation7], 1
    %s1626 = scalar_lea.sflag [#allocation7], 1
    %1627 = vsyncpa %s1626, 1
    %1628 = vsyncpa [#allocation10], 1
    %1629 = vsyncpa [#allocation13], 1
    %1630 = vsyncpa [#allocation8], 1
    %s1631 = scalar_lea.sflag [#allocation8], 1
    %1632 = vsyncpa %s1631, 1

</llo_original>
